<compile_context>
chip_gen: v6e
topology: v6e:2x2x1
jax: 0.10.0
libtpu: 0.0.40
codegen_flags: <defaults>
</compile_context>

<pallas_src>
import functools

import jax
import jax.numpy as jnp
from jax import lax
from jax.experimental import pallas as pl
from jax.experimental.pallas import tpu as pltpu

LANE = 128          # TPU vreg lane width
SUBLANE_F32 = 8     # f32 sublane packing
SUBLANE_BF16 = 16   # bf16 sublane packing


def _round_up(x, m):
    return ((x + m - 1) // m) * m


def _pad2d(a, rows, cols):
    r, c = a.shape
    return jnp.pad(a, ((0, rows - r), (0, cols - c)))


def combined_kernel(x_ref,
                    w1_ref, b1_ref, w2_ref, b2_ref,   # model_radar (norm folded into w2/b2)
                    w3_ref, b3_ref, w4_ref, b4_ref,   # model_cmd
                    out_ref,
                    *, num_classes):
    x = x_ref[...]

    # ---- model_radar: Linear -> ReLU -> Linear (cmd normalization pre-folded) ----
    h1 = jnp.dot(x, w1_ref[...], preferred_element_type=jnp.float32) + b1_ref[...]
    h1 = jnp.maximum(h1, 0.0)
    cmd = jnp.dot(h1.astype(w2_ref.dtype), w2_ref[...],
                  preferred_element_type=jnp.float32) + b2_ref[...]

    # ---- model_cmd: Linear -> ReLU -> Linear ----
    h2 = jnp.dot(cmd.astype(w3_ref.dtype), w3_ref[...],
                 preferred_element_type=jnp.float32) + b3_ref[...]
    h2 = jnp.maximum(h2, 0.0)
    logits = jnp.dot(h2.astype(w4_ref.dtype), w4_ref[...],
                     preferred_element_type=jnp.float32) + b4_ref[...]

    # ---- Softmax over dim=1; padded class columns masked out ----
    if num_classes < logits.shape[1]:
        col = lax.broadcasted_iota(jnp.int32, logits.shape, 1)
        logits = jnp.where(col < num_classes, logits, jnp.float32(-1e30))
    m = jnp.max(logits, axis=1, keepdims=True)
    e = jnp.exp(logits - m)
    s = jnp.sum(e, axis=1, keepdims=True)
    # Full-precision reciprocal: the kernel is HBM/MXU bound, so the EUP
    # approx path buys nothing and would risk the 1e-5 f32 check.
    out_ref[...] = e * pl.reciprocal(s, approx=False)


def _vmem_cap_bytes():
    """Generation-aware scoped-VMEM cap: physical capacity minus headroom."""
    try:
        phys = int(getattr(pltpu.get_tpu_info(), "vmem_capacity_bytes"))
    except Exception:
        phys = 64 << 20  # conservative: v7x per-TensorCore capacity
    # ~40 MiB cap on v7x (64 MiB phys), up to ~100 MiB on v5e/v6e (128 MiB).
    return max(16 << 20, min(phys - (24 << 20), 100 << 20))


def combined_model_forward(x_nchw, params, *, tile_b=1024, use_bf16=False,
                           single_buffer_weights=True):
    B = x_nchw.shape[0]
    x_flat = x_nchw.reshape(B, -1).astype(jnp.float32)   # torch x.view(B, -1)
    d_in = x_flat.shape[1]

    w1, b1 = params["w1"], params["b1"]
    w2, b2 = params["w2"], params["b2"]
    w3, b3 = params["w3"], params["b3"]
    w4, b4 = params["w4"], params["b4"]
    mean_cmd, std_cmd = params["mean_cmd"], params["std_cmd"]

    # Fold (x - mean_cmd)/std_cmd into the second radar Linear at trace time.
    inv_std = 1.0 / std_cmd
    w2f = w2 * inv_std                 # scale output columns
    b2f = (b2 - mean_cmd) * inv_std

    h1_dim, cmd_dim, h2_dim, nc = w1.shape[1], w2.shape[1], w3.shape[1], w4.shape[1]

    # Keep every hidden/class dim padded to a full 128-lane multiple: lane-dense
    # MXU operands and unmasked vst stores.  The extra zero-K work on the small
    # matmuls hides under the x DMA, so we deliberately do NOT shrink these.
    d_pad   = _round_up(d_in, LANE)
    h1_pad  = _round_up(h1_dim, LANE)
    cmd_pad = _round_up(cmd_dim, LANE)
    h2_pad  = _round_up(h2_dim, LANE)
    nc_pad  = _round_up(nc, LANE)

    # x: NO batch padding (Pallas clips the partial last block; OOB output rows
    # are dropped).  Only pad the feature dim when it is not lane-aligned.
    x_p = x_flat if d_pad == d_in else jnp.pad(x_flat, ((0, 0), (0, d_pad - d_in)))

    w1_p = _pad2d(w1,  d_pad,   h1_pad);  b1_p = _pad2d(b1,  1, h1_pad)
    w2_p = _pad2d(w2f, h1_pad,  cmd_pad); b2_p = _pad2d(b2f, 1, cmd_pad)
    w3_p = _pad2d(w3,  cmd_pad, h2_pad);  b3_p = _pad2d(b3,  1, h2_pad)
    w4_p = _pad2d(w4,  h2_pad,  nc_pad);  b4_p = _pad2d(b4,  1, nc_pad)

    if use_bf16:
        # bf16 matmul operands, f32 accumulation / biases / softmax.  Halves the
        # x DMA bytes and runs the MXU at full bf16 rate; in a real pipeline the
        # x cast should be fused into the producer (or x arrive as bf16).
        # TODO(synk): bf16 operands change numerics vs the f32 torch reference.
        x_p, w1_p, w2_p, w3_p, w4_p = (a.astype(jnp.bfloat16)
                                       for a in (x_p, w1_p, w2_p, w3_p, w4_p))

    itemsize = 2 if use_bf16 else 4
    row_align = SUBLANE_BF16 if use_bf16 else SUBLANE_F32

    # Batch tiling: for non-tiny B guarantee >=2 grid steps so the "parallel"
    # batch axis shards across both TensorCores on v7x megacore; for tiny B use
    # one full-batch block (block dim == full array dim is always legal).
    if B <= row_align:
        tile_b_eff = B
    else:
        per_core = _round_up(pl.cdiv(B, 2), row_align)
        tile_b_eff = max(row_align, min(tile_b, per_core))

    vmem_cap = _vmem_cap_bytes()

    def _vmem_bytes(tb, weight_buffers):
        weight_bytes = weight_buffers * (
            itemsize * (d_pad * h1_pad + h1_pad * cmd_pad
                        + cmd_pad * h2_pad + h2_pad * nc_pad)
            + 4 * (h1_pad + cmd_pad + h2_pad + nc_pad))
        io_bytes = 2 * (itemsize * tb * d_pad + 4 * tb * nc_pad)   # double-buffered x/out
        act_bytes = 4 * tb * (h1_pad + cmd_pad + h2_pad + 2 * nc_pad)
        return weight_bytes + io_bytes + act_bytes

    # Shrink the batch tile if the (generous, 2x-slack) estimate would blow the
    # generation-aware VMEM cap (matters on v7x's 64 MiB/TC with big tiles).
    while tile_b_eff > row_align and 2 * _vmem_bytes(tile_b_eff, 2) + (4 << 20) > vmem_cap:
        tile_b_eff = max(row_align, _round_up(tile_b_eff // 2, row_align))

    grid = (int(pl.cdiv(B, tile_b_eff)),)

    def build_call(weight_buffers):
        if weight_buffers == 1:
            # Constant index_map weights never change across grid steps ->
            # single-buffer them to free VMEM for bigger x tiles.
            def const_spec(shape):
                return pl.BlockSpec(shape, lambda i: (0, 0),
                                    pipeline_mode=pl.Buffered(1))
        else:
            def const_spec(shape):
                return pl.BlockSpec(shape, lambda i: (0, 0))

        in_specs = [
            pl.BlockSpec((tile_b_eff, d_pad), lambda i: (i, 0)),   # x tile, pipelined
            const_spec((d_pad,   h1_pad)),  const_spec((1, h1_pad)),
            const_spec((h1_pad,  cmd_pad)), const_spec((1, cmd_pad)),
            const_spec((cmd_pad, h2_pad)),  const_spec((1, h2_pad)),
            const_spec((h2_pad,  nc_pad)),  const_spec((1, nc_pad)),
        ]
        out_specs = pl.BlockSpec((tile_b_eff, nc_pad), lambda i: (i, 0))

        # Advisory cost estimate for the XLA scheduler (actual B, no batch pad).
        flops = 2 * B * (d_pad * h1_pad + h1_pad * cmd_pad
                         + cmd_pad * h2_pad + h2_pad * nc_pad)
        bytes_accessed = (itemsize * (B * d_pad + d_pad * h1_pad + h1_pad * cmd_pad
                                      + cmd_pad * h2_pad + h2_pad * nc_pad)
                          + 4 * (B * nc_pad + h1_pad + cmd_pad + h2_pad + nc_pad))
        cost = pl.CostEstimate(flops=flops, transcendentals=B * nc_pad,
                               bytes_accessed=bytes_accessed)

        vmem_limit = int(min(max(2 * _vmem_bytes(tile_b_eff, weight_buffers) + (4 << 20),
                                 32 << 20),
                             vmem_cap))

        return pl.pallas_call(
            functools.partial(combined_kernel, num_classes=nc),
            out_shape=jax.ShapeDtypeStruct((B, nc_pad), jnp.float32),
            grid_spec=pltpu.PrefetchScalarGridSpec(
                num_scalar_prefetch=0,
                grid=grid,
                in_specs=in_specs,
                out_specs=out_specs,
            ),
            compiler_params=pltpu.CompilerParams(
                dimension_semantics=("parallel",),   # batch shards across v7x TCs
                vmem_limit_bytes=vmem_limit,
            ),
            cost_estimate=cost,
        )

    args = (x_p, w1_p, b1_p, w2_p, b2_p, w3_p, b3_p, w4_p, b4_p)
    if single_buffer_weights:
        try:
            out_padded = build_call(1)(*args)
        except Exception:
            # Fallback if this JAX build rejects single-buffered BlockSpecs.
            out_padded = build_call(2)(*args)
    else:
        out_padded = build_call(2)(*args)

    return out_padded[:, :nc]


def make_params(key, d_in, h1, cmd_dim, h2, num_classes):
    ks = jax.random.split(key, 8)
    scale = 0.05
    return {
        "w1": scale * jax.random.normal(ks[0], (d_in, h1), jnp.float32),
        "b1": scale * jax.random.normal(ks[1], (1, h1), jnp.float32),
        "w2": scale * jax.random.normal(ks[2], (h1, cmd_dim), jnp.float32),
        "b2": scale * jax.random.normal(ks[3], (1, cmd_dim), jnp.float32),
        "mean_cmd": 0.1 * jax.random.normal(ks[4], (1, cmd_dim), jnp.float32),
        "std_cmd": 0.5 + jnp.abs(jax.random.normal(ks[5], (1, cmd_dim), jnp.float32)),
        "w3": scale * jax.random.normal(ks[6], (cmd_dim, h2), jnp.float32),
        "b3": jnp.zeros((1, h2), jnp.float32),
        "w4": scale * jax.random.normal(ks[7], (h2, num_classes), jnp.float32),
        "b4": jnp.zeros((1, num_classes), jnp.float32),
    }


def reference_forward(x_nchw, p):
    # Pure-JAX reference (mirrors the PyTorch CombinedModel.forward).
    B = x_nchw.shape[0]
    x = x_nchw.reshape(B, -1).astype(jnp.float32)
    h1 = jnp.maximum(x @ p["w1"] + p["b1"], 0.0)
    cmd = h1 @ p["w2"] + p["b2"]
    cmd = (cmd - p["mean_cmd"]) / p["std_cmd"]
    h2 = jnp.maximum(cmd @ p["w3"] + p["b3"], 0.0)
    logits = h2 @ p["w4"] + p["b4"]
    return jax.nn.softmax(logits, axis=1)


if __name__ == "__main__":
    # Small shapes consistent with the module's forward (NCHW radar input).
    B, C, H, W = 2, 4, 16, 16
    D_IN = C * H * W          # 1024 (lane-aligned -> x needs no host-side pad)
    H1 = 32                   # radar hidden
    CMD_DIM = 8               # command-vector dim (mean_cmd / std_cmd length)
    H2 = 32                   # cmd-model hidden
    NUM_CLASSES = 8           # softmax over dim=1

    key = jax.random.PRNGKey(0)
    kx, kp = jax.random.split(key)
    x = jax.random.normal(kx, (B, C, H, W), jnp.float32)
    params = make_params(kp, D_IN, H1, CMD_DIM, H2, NUM_CLASSES)

    ref = reference_forward(x, params)

    # f32 path: strict check against the pure-JAX reference.
    out = jax.block_until_ready(combined_model_forward(x, params, use_bf16=False))
    assert out.shape == (B, NUM_CLASSES)
    assert jnp.allclose(out, ref, atol=1e-5, rtol=1e-5), "f32 mismatch vs reference"
    assert jnp.allclose(jnp.sum(out, axis=1), jnp.ones((B,)), atol=1e-5)

    # bf16 fast path (v5e/v6e/v7x DMA/MXU win): looser tolerance by design.
    out_bf16 = jax.block_until_ready(combined_model_forward(x, params, use_bf16=True))
    assert out_bf16.shape == (B, NUM_CLASSES)
    assert jnp.all(jnp.isfinite(out_bf16))
    assert jnp.allclose(jnp.sum(out_bf16, axis=1), jnp.ones((B,)), atol=1e-3)
    assert jnp.allclose(out_bf16, ref, atol=5e-2, rtol=5e-2), "bf16 mismatch vs reference"

    print("KERNEL_OK")
</pallas_src>

<mosaic_0001>
module attributes {stable_mosaic.version = 11 : i64} {
  func.func @combined_kernel(%arg0: i32, %arg1: memref<2x1024xf32, #tpu.memory_space<vmem>>, %arg2: memref<1024x128xf32, #tpu.memory_space<vmem>>, %arg3: memref<1x128xf32, #tpu.memory_space<vmem>>, %arg4: memref<128x128xf32, #tpu.memory_space<vmem>>, %arg5: memref<1x128xf32, #tpu.memory_space<vmem>>, %arg6: memref<128x128xf32, #tpu.memory_space<vmem>>, %arg7: memref<1x128xf32, #tpu.memory_space<vmem>>, %arg8: memref<128x128xf32, #tpu.memory_space<vmem>>, %arg9: memref<1x128xf32, #tpu.memory_space<vmem>>, %arg10: memref<2x128xf32, #tpu.memory_space<vmem>>) attributes {dimension_semantics = [#tpu.dimension_semantics<parallel>], iteration_bounds = array<i64: 1>, scalar_prefetch = 0 : i64, scratch_operands = 0 : i64, tpu.core_type = #tpu.core_type<tc>, window_params = [{transform_indices = @transform_0, window_bounds = array<i64: 2, 1024>}, {pipeline_mode = #tpu.pipeline_mode<synchronous>, transform_indices = @transform_1, window_bounds = array<i64: 1024, 128>}, {pipeline_mode = #tpu.pipeline_mode<synchronous>, transform_indices = @transform_2, window_bounds = array<i64: 1, 128>}, {pipeline_mode = #tpu.pipeline_mode<synchronous>, transform_indices = @transform_3, window_bounds = array<i64: 128, 128>}, {pipeline_mode = #tpu.pipeline_mode<synchronous>, transform_indices = @transform_4, window_bounds = array<i64: 1, 128>}, {pipeline_mode = #tpu.pipeline_mode<synchronous>, transform_indices = @transform_5, window_bounds = array<i64: 128, 128>}, {pipeline_mode = #tpu.pipeline_mode<synchronous>, transform_indices = @transform_6, window_bounds = array<i64: 1, 128>}, {pipeline_mode = #tpu.pipeline_mode<synchronous>, transform_indices = @transform_7, window_bounds = array<i64: 128, 128>}, {pipeline_mode = #tpu.pipeline_mode<synchronous>, transform_indices = @transform_8, window_bounds = array<i64: 1, 128>}, {transform_indices = @transform_9, window_bounds = array<i64: 2, 128>}]} {
    %c0 = arith.constant 0 : index
    %c0_0 = arith.constant 0 : index
    %0 = vector.load %arg1[%c0, %c0_0] : memref<2x1024xf32, #tpu.memory_space<vmem>>, vector<2x1024xf32>
    %c0_1 = arith.constant 0 : index
    %c0_2 = arith.constant 0 : index
    %1 = vector.load %arg2[%c0_1, %c0_2] : memref<1024x128xf32, #tpu.memory_space<vmem>>, vector<1024x128xf32>
    %cst = arith.constant dense<0.000000e+00> : vector<2x128xf32>
    %2 = tpu.matmul %0, %1, %cst {dimension_numbers = #tpu.dot_dimension_numbers<[1], [0], [0], [1], [0, 0, 1, 1], [], []>} : vector<2x1024xf32>, vector<1024x128xf32>, vector<2x128xf32> -> vector<2x128xf32>
    %c0_3 = arith.constant 0 : index
    %c0_4 = arith.constant 0 : index
    %3 = vector.load %arg3[%c0_3, %c0_4] : memref<1x128xf32, #tpu.memory_space<vmem>>, vector<1x128xf32>
    %4 = vector.broadcast %3 : vector<1x128xf32> to vector<2x128xf32>
    %5 = arith.addf %2, %4 : vector<2x128xf32>
    %cst_5 = arith.constant 0.000000e+00 : f32
    %6 = vector.broadcast %cst_5 : f32 to vector<2x128xf32>
    %7 = arith.maximumf %5, %6 : vector<2x128xf32>
    %c0_6 = arith.constant 0 : index
    %c0_7 = arith.constant 0 : index
    %8 = vector.load %arg4[%c0_6, %c0_7] : memref<128x128xf32, #tpu.memory_space<vmem>>, vector<128x128xf32>
    %cst_8 = arith.constant dense<0.000000e+00> : vector<2x128xf32>
    %9 = tpu.matmul %7, %8, %cst_8 {dimension_numbers = #tpu.dot_dimension_numbers<[1], [0], [0], [1], [0, 0, 1, 1], [], []>} : vector<2x128xf32>, vector<128x128xf32>, vector<2x128xf32> -> vector<2x128xf32>
    %c0_9 = arith.constant 0 : index
    %c0_10 = arith.constant 0 : index
    %10 = vector.load %arg5[%c0_9, %c0_10] : memref<1x128xf32, #tpu.memory_space<vmem>>, vector<1x128xf32>
    %11 = vector.broadcast %10 : vector<1x128xf32> to vector<2x128xf32>
    %12 = arith.addf %9, %11 : vector<2x128xf32>
    %c0_11 = arith.constant 0 : index
    %c0_12 = arith.constant 0 : index
    %13 = vector.load %arg6[%c0_11, %c0_12] : memref<128x128xf32, #tpu.memory_space<vmem>>, vector<128x128xf32>
    %cst_13 = arith.constant dense<0.000000e+00> : vector<2x128xf32>
    %14 = tpu.matmul %12, %13, %cst_13 {dimension_numbers = #tpu.dot_dimension_numbers<[1], [0], [0], [1], [0, 0, 1, 1], [], []>} : vector<2x128xf32>, vector<128x128xf32>, vector<2x128xf32> -> vector<2x128xf32>
    %c0_14 = arith.constant 0 : index
    %c0_15 = arith.constant 0 : index
    %15 = vector.load %arg7[%c0_14, %c0_15] : memref<1x128xf32, #tpu.memory_space<vmem>>, vector<1x128xf32>
    %16 = vector.broadcast %15 : vector<1x128xf32> to vector<2x128xf32>
    %17 = arith.addf %14, %16 : vector<2x128xf32>
    %cst_16 = arith.constant 0.000000e+00 : f32
    %18 = vector.broadcast %cst_16 : f32 to vector<2x128xf32>
    %19 = arith.maximumf %17, %18 : vector<2x128xf32>
    %c0_17 = arith.constant 0 : index
    %c0_18 = arith.constant 0 : index
    %20 = vector.load %arg8[%c0_17, %c0_18] : memref<128x128xf32, #tpu.memory_space<vmem>>, vector<128x128xf32>
    %cst_19 = arith.constant dense<0.000000e+00> : vector<2x128xf32>
    %21 = tpu.matmul %19, %20, %cst_19 {dimension_numbers = #tpu.dot_dimension_numbers<[1], [0], [0], [1], [0, 0, 1, 1], [], []>} : vector<2x128xf32>, vector<128x128xf32>, vector<2x128xf32> -> vector<2x128xf32>
    %c0_20 = arith.constant 0 : index
    %c0_21 = arith.constant 0 : index
    %22 = vector.load %arg9[%c0_20, %c0_21] : memref<1x128xf32, #tpu.memory_space<vmem>>, vector<1x128xf32>
    %23 = vector.broadcast %22 : vector<1x128xf32> to vector<2x128xf32>
    %24 = arith.addf %21, %23 : vector<2x128xf32>
    %25 = tpu.iota {dimensions = array<i32: 1>} : vector<2x128xi32>
    %c8_i32 = arith.constant 8 : i32
    %26 = vector.broadcast %c8_i32 : i32 to vector<2x128xi32>
    %27 = arith.cmpi slt, %25, %26 : vector<2x128xi32>
    %cst_22 = arith.constant -1.000000e+30 : f32
    %28 = vector.broadcast %cst_22 : f32 to vector<2x128xf32>
    %29 = arith.select %27, %24, %28 : vector<2x128xi1>, vector<2x128xf32>
    %cst_23 = arith.constant dense<0xFF800000> : vector<2xf32>
    %30 = vector.multi_reduction <maximumf>, %29, %cst_23 [1] : vector<2x128xf32> to vector<2xf32>
    %31 = vector.shape_cast %30 : vector<2xf32> to vector<2x1xf32>
    %32 = vector.broadcast %31 : vector<2x1xf32> to vector<2x128xf32>
    %33 = arith.subf %29, %32 : vector<2x128xf32>
    %34 = math.exp %33 : vector<2x128xf32>
    %cst_24 = arith.constant dense<0.000000e+00> : vector<2xf32>
    %35 = vector.multi_reduction <add>, %34, %cst_24 [1] : vector<2x128xf32> to vector<2xf32>
    %36 = vector.shape_cast %35 : vector<2xf32> to vector<2x1xf32>
    %37 = tpu.reciprocal %36 : vector<2x1xf32> -> vector<2x1xf32>
    %38 = vector.broadcast %37 : vector<2x1xf32> to vector<2x128xf32>
    %39 = arith.mulf %34, %38 : vector<2x128xf32>
    %c0_25 = arith.constant 0 : index
    %c0_26 = arith.constant 0 : index
    %40 = vector.load %arg10[%c0_25, %c0_26] : memref<2x128xf32, #tpu.memory_space<vmem>>, vector<2x128xf32>
    tpu.vector_store %arg10[%c0_25, %c0_26], %39 {strides = array<i32>} : memref<2x128xf32, #tpu.memory_space<vmem>>, vector<2x128xf32>,
    return
  }
  func.func @transform_0(%arg0: i32) -> (i32, i32) {
    %c0_i32 = arith.constant 0 : i32
    %c0_i32_0 = arith.constant 0 : i32
    return %arg0, %c0_i32 : i32, i32
  }
  func.func @transform_1(%arg0: i32) -> (i32, i32) {
    %c0_i32 = arith.constant 0 : i32
    %c0_i32_0 = arith.constant 0 : i32
    %c0_i32_1 = arith.constant 0 : i32
    return %c0_i32, %c0_i32_0 : i32, i32
  }
  func.func @transform_2(%arg0: i32) -> (i32, i32) {
    %c0_i32 = arith.constant 0 : i32
    %c0_i32_0 = arith.constant 0 : i32
    %c0_i32_1 = arith.constant 0 : i32
    return %c0_i32, %c0_i32_0 : i32, i32
  }
  func.func @transform_3(%arg0: i32) -> (i32, i32) {
    %c0_i32 = arith.constant 0 : i32
    %c0_i32_0 = arith.constant 0 : i32
    %c0_i32_1 = arith.constant 0 : i32
    return %c0_i32, %c0_i32_0 : i32, i32
  }
  func.func @transform_4(%arg0: i32) -> (i32, i32) {
    %c0_i32 = arith.constant 0 : i32
    %c0_i32_0 = arith.constant 0 : i32
    %c0_i32_1 = arith.constant 0 : i32
    return %c0_i32, %c0_i32_0 : i32, i32
  }
  func.func @transform_5(%arg0: i32) -> (i32, i32) {
    %c0_i32 = arith.constant 0 : i32
    %c0_i32_0 = arith.constant 0 : i32
    %c0_i32_1 = arith.constant 0 : i32
    return %c0_i32, %c0_i32_0 : i32, i32
  }
  func.func @transform_6(%arg0: i32) -> (i32, i32) {
    %c0_i32 = arith.constant 0 : i32
    %c0_i32_0 = arith.constant 0 : i32
    %c0_i32_1 = arith.constant 0 : i32
    return %c0_i32, %c0_i32_0 : i32, i32
  }
  func.func @transform_7(%arg0: i32) -> (i32, i32) {
    %c0_i32 = arith.constant 0 : i32
    %c0_i32_0 = arith.constant 0 : i32
    %c0_i32_1 = arith.constant 0 : i32
    return %c0_i32, %c0_i32_0 : i32, i32
  }
  func.func @transform_8(%arg0: i32) -> (i32, i32) {
    %c0_i32 = arith.constant 0 : i32
    %c0_i32_0 = arith.constant 0 : i32
    %c0_i32_1 = arith.constant 0 : i32
    return %c0_i32, %c0_i32_0 : i32, i32
  }
  func.func @transform_9(%arg0: i32) -> (i32, i32) {
    %c0_i32 = arith.constant 0 : i32
    %c0_i32_0 = arith.constant 0 : i32
    return %arg0, %c0_i32 : i32, i32
  }
}

module attributes {stable_mosaic.version = 11 : i64} {
  func.func @combined_kernel(%arg0: i32, %arg1: memref<2x1024xf32, #tpu.memory_space<vmem>>, %arg2: memref<1024x128xf32, #tpu.memory_space<vmem>>, %arg3: memref<1x128xf32, #tpu.memory_space<vmem>>, %arg4: memref<128x128xf32, #tpu.memory_space<vmem>>, %arg5: memref<1x128xf32, #tpu.memory_space<vmem>>, %arg6: memref<128x128xf32, #tpu.memory_space<vmem>>, %arg7: memref<1x128xf32, #tpu.memory_space<vmem>>, %arg8: memref<128x128xf32, #tpu.memory_space<vmem>>, %arg9: memref<1x128xf32, #tpu.memory_space<vmem>>, %arg10: memref<2x128xf32, #tpu.memory_space<vmem>>) attributes {dimension_semantics = [#tpu.dimension_semantics<parallel>], iteration_bounds = array<i64: 1>, scalar_prefetch = 0 : i64, scratch_operands = 0 : i64, tpu.core_type = #tpu.core_type<tc>, window_params = [{transform_indices = @transform_0, window_bounds = array<i64: 2, 1024>}, {pipeline_mode = #tpu.pipeline_mode<synchronous>, transform_indices = @transform_1, window_bounds = array<i64: 1024, 128>}, {pipeline_mode = #tpu.pipeline_mode<synchronous>, transform_indices = @transform_2, window_bounds = array<i64: 1, 128>}, {pipeline_mode = #tpu.pipeline_mode<synchronous>, transform_indices = @transform_3, window_bounds = array<i64: 128, 128>}, {pipeline_mode = #tpu.pipeline_mode<synchronous>, transform_indices = @transform_4, window_bounds = array<i64: 1, 128>}, {pipeline_mode = #tpu.pipeline_mode<synchronous>, transform_indices = @transform_5, window_bounds = array<i64: 128, 128>}, {pipeline_mode = #tpu.pipeline_mode<synchronous>, transform_indices = @transform_6, window_bounds = array<i64: 1, 128>}, {pipeline_mode = #tpu.pipeline_mode<synchronous>, transform_indices = @transform_7, window_bounds = array<i64: 128, 128>}, {pipeline_mode = #tpu.pipeline_mode<synchronous>, transform_indices = @transform_8, window_bounds = array<i64: 1, 128>}, {transform_indices = @transform_9, window_bounds = array<i64: 2, 128>}]} {
    %c0 = arith.constant 0 : index
    %c0_0 = arith.constant 0 : index
    %0 = vector.load %arg1[%c0, %c0_0] : memref<2x1024xf32, #tpu.memory_space<vmem>>, vector<2x1024xf32>
    %c0_1 = arith.constant 0 : index
    %c0_2 = arith.constant 0 : index
    %1 = vector.load %arg2[%c0_1, %c0_2] : memref<1024x128xf32, #tpu.memory_space<vmem>>, vector<1024x128xf32>
    %cst = arith.constant dense<0.000000e+00> : vector<2x128xf32>
    %2 = tpu.matmul %0, %1, %cst {dimension_numbers = #tpu.dot_dimension_numbers<[1], [0], [0], [1], [0, 0, 1, 1], [], []>} : vector<2x1024xf32>, vector<1024x128xf32>, vector<2x128xf32> -> vector<2x128xf32>
    %c0_3 = arith.constant 0 : index
    %c0_4 = arith.constant 0 : index
    %3 = vector.load %arg3[%c0_3, %c0_4] : memref<1x128xf32, #tpu.memory_space<vmem>>, vector<1x128xf32>
    %4 = vector.broadcast %3 : vector<1x128xf32> to vector<2x128xf32>
    %5 = arith.addf %2, %4 : vector<2x128xf32>
    %cst_5 = arith.constant 0.000000e+00 : f32
    %6 = vector.broadcast %cst_5 : f32 to vector<2x128xf32>
    %7 = arith.maximumf %5, %6 : vector<2x128xf32>
    %c0_6 = arith.constant 0 : index
    %c0_7 = arith.constant 0 : index
    %8 = vector.load %arg4[%c0_6, %c0_7] : memref<128x128xf32, #tpu.memory_space<vmem>>, vector<128x128xf32>
    %cst_8 = arith.constant dense<0.000000e+00> : vector<2x128xf32>
    %9 = tpu.matmul %7, %8, %cst_8 {dimension_numbers = #tpu.dot_dimension_numbers<[1], [0], [0], [1], [0, 0, 1, 1], [], []>} : vector<2x128xf32>, vector<128x128xf32>, vector<2x128xf32> -> vector<2x128xf32>
    %c0_9 = arith.constant 0 : index
    %c0_10 = arith.constant 0 : index
    %10 = vector.load %arg5[%c0_9, %c0_10] : memref<1x128xf32, #tpu.memory_space<vmem>>, vector<1x128xf32>
    %11 = vector.broadcast %10 : vector<1x128xf32> to vector<2x128xf32>
    %12 = arith.addf %9, %11 : vector<2x128xf32>
    %c0_11 = arith.constant 0 : index
    %c0_12 = arith.constant 0 : index
    %13 = vector.load %arg6[%c0_11, %c0_12] : memref<128x128xf32, #tpu.memory_space<vmem>>, vector<128x128xf32>
    %cst_13 = arith.constant dense<0.000000e+00> : vector<2x128xf32>
    %14 = tpu.matmul %12, %13, %cst_13 {dimension_numbers = #tpu.dot_dimension_numbers<[1], [0], [0], [1], [0, 0, 1, 1], [], []>} : vector<2x128xf32>, vector<128x128xf32>, vector<2x128xf32> -> vector<2x128xf32>
    %c0_14 = arith.constant 0 : index
    %c0_15 = arith.constant 0 : index
    %15 = vector.load %arg7[%c0_14, %c0_15] : memref<1x128xf32, #tpu.memory_space<vmem>>, vector<1x128xf32>
    %16 = vector.broadcast %15 : vector<1x128xf32> to vector<2x128xf32>
    %17 = arith.addf %14, %16 : vector<2x128xf32>
    %cst_16 = arith.constant 0.000000e+00 : f32
    %18 = vector.broadcast %cst_16 : f32 to vector<2x128xf32>
    %19 = arith.maximumf %17, %18 : vector<2x128xf32>
    %c0_17 = arith.constant 0 : index
    %c0_18 = arith.constant 0 : index
    %20 = vector.load %arg8[%c0_17, %c0_18] : memref<128x128xf32, #tpu.memory_space<vmem>>, vector<128x128xf32>
    %cst_19 = arith.constant dense<0.000000e+00> : vector<2x128xf32>
    %21 = tpu.matmul %19, %20, %cst_19 {dimension_numbers = #tpu.dot_dimension_numbers<[1], [0], [0], [1], [0, 0, 1, 1], [], []>} : vector<2x128xf32>, vector<128x128xf32>, vector<2x128xf32> -> vector<2x128xf32>
    %c0_20 = arith.constant 0 : index
    %c0_21 = arith.constant 0 : index
    %22 = vector.load %arg9[%c0_20, %c0_21] : memref<1x128xf32, #tpu.memory_space<vmem>>, vector<1x128xf32>
    %23 = vector.broadcast %22 : vector<1x128xf32> to vector<2x128xf32>
    %24 = arith.addf %21, %23 : vector<2x128xf32>
    %25 = tpu.iota {dimensions = array<i32: 1>} : vector<2x128xi32>
    %c8_i32 = arith.constant 8 : i32
    %26 = vector.broadcast %c8_i32 : i32 to vector<2x128xi32>
    %27 = arith.cmpi slt, %25, %26 : vector<2x128xi32>
    %cst_22 = arith.constant -1.000000e+30 : f32
    %28 = vector.broadcast %cst_22 : f32 to vector<2x128xf32>
    %29 = arith.select %27, %24, %28 : vector<2x128xi1>, vector<2x128xf32>
    %cst_23 = arith.constant dense<0xFF800000> : vector<2xf32>
    %30 = vector.multi_reduction <maximumf>, %29, %cst_23 [1] : vector<2x128xf32> to vector<2xf32>
    %31 = vector.shape_cast %30 : vector<2xf32> to vector<2x1xf32>
    %32 = vector.broadcast %31 : vector<2x1xf32> to vector<2x128xf32>
    %33 = arith.subf %29, %32 : vector<2x128xf32>
    %34 = math.exp %33 : vector<2x128xf32>
    %cst_24 = arith.constant dense<0.000000e+00> : vector<2xf32>
    %35 = vector.multi_reduction <add>, %34, %cst_24 [1] : vector<2x128xf32> to vector<2xf32>
    %36 = vector.shape_cast %35 : vector<2xf32> to vector<2x1xf32>
    %37 = tpu.reciprocal %36 : vector<2x1xf32> -> vector<2x1xf32>
    %38 = vector.broadcast %37 : vector<2x1xf32> to vector<2x128xf32>
    %39 = arith.mulf %34, %38 : vector<2x128xf32>
    %c0_25 = arith.constant 0 : index
    %c0_26 = arith.constant 0 : index
    %40 = vector.load %arg10[%c0_25, %c0_26] : memref<2x128xf32, #tpu.memory_space<vmem>>, vector<2x128xf32>
    tpu.vector_store %arg10[%c0_25, %c0_26], %39 {strides = array<i32>} : memref<2x128xf32, #tpu.memory_space<vmem>>, vector<2x128xf32>,
    return
  }
  func.func @transform_0(%arg0: i32) -> (i32, i32) {
    %c0_i32 = arith.constant 0 : i32
    %c0_i32_0 = arith.constant 0 : i32
    return %arg0, %c0_i32 : i32, i32
  }
  func.func @transform_1(%arg0: i32) -> (i32, i32) {
    %c0_i32 = arith.constant 0 : i32
    %c0_i32_0 = arith.constant 0 : i32
    %c0_i32_1 = arith.constant 0 : i32
    return %c0_i32, %c0_i32_0 : i32, i32
  }
  func.func @transform_2(%arg0: i32) -> (i32, i32) {
    %c0_i32 = arith.constant 0 : i32
    %c0_i32_0 = arith.constant 0 : i32
    %c0_i32_1 = arith.constant 0 : i32
    return %c0_i32, %c0_i32_0 : i32, i32
  }
  func.func @transform_3(%arg0: i32) -> (i32, i32) {
    %c0_i32 = arith.constant 0 : i32
    %c0_i32_0 = arith.constant 0 : i32
    %c0_i32_1 = arith.constant 0 : i32
    return %c0_i32, %c0_i32_0 : i32, i32
  }
  func.func @transform_4(%arg0: i32) -> (i32, i32) {
    %c0_i32 = arith.constant 0 : i32
    %c0_i32_0 = arith.constant 0 : i32
    %c0_i32_1 = arith.constant 0 : i32
    return %c0_i32, %c0_i32_0 : i32, i32
  }
  func.func @transform_5(%arg0: i32) -> (i32, i32) {
    %c0_i32 = arith.constant 0 : i32
    %c0_i32_0 = arith.constant 0 : i32
    %c0_i32_1 = arith.constant 0 : i32
    return %c0_i32, %c0_i32_0 : i32, i32
  }
  func.func @transform_6(%arg0: i32) -> (i32, i32) {
    %c0_i32 = arith.constant 0 : i32
    %c0_i32_0 = arith.constant 0 : i32
    %c0_i32_1 = arith.constant 0 : i32
    return %c0_i32, %c0_i32_0 : i32, i32
  }
  func.func @transform_7(%arg0: i32) -> (i32, i32) {
    %c0_i32 = arith.constant 0 : i32
    %c0_i32_0 = arith.constant 0 : i32
    %c0_i32_1 = arith.constant 0 : i32
    return %c0_i32, %c0_i32_0 : i32, i32
  }
  func.func @transform_8(%arg0: i32) -> (i32, i32) {
    %c0_i32 = arith.constant 0 : i32
    %c0_i32_0 = arith.constant 0 : i32
    %c0_i32_1 = arith.constant 0 : i32
    return %c0_i32, %c0_i32_0 : i32, i32
  }
  func.func @transform_9(%arg0: i32) -> (i32, i32) {
    %c0_i32 = arith.constant 0 : i32
    %c0_i32_0 = arith.constant 0 : i32
    return %arg0, %c0_i32 : i32, i32
  }
}

</mosaic_0001>

<llo_original>
// kernel: tpu_custom_call.1
$region0: #{tpu_custom_call.1}
  #allocation0 [shape = 'u32[]', space=smem, size = 0x4, offset = 0x4, fixed_abs, tag = 'smem constant byte address 0x4 - core index']
  #allocation1 [shape = 'u32[144,128]{1,0:T(1,128)}', space=vmem, size = 0x12000, scoped, tag = 'internal scratch']
  %s0 = inlined_call_operand.hbm [shape: f32[2,1024], index: 0, kind: input, shape index: {}]
  %s1 = inlined_call_operand.hbm [shape: f32[1024,128], index: 1, kind: input, shape index: {}]
  %s2 = inlined_call_operand.vmem [shape: f32[1,128], index: 2, kind: input, shape index: {}]
  %s3 = inlined_call_operand.hbm [shape: f32[128,128], index: 3, kind: input, shape index: {}]
  %s4 = inlined_call_operand.vmem [shape: f32[1,128], index: 4, kind: input, shape index: {}]
  %s5 = inlined_call_operand.hbm [shape: f32[128,128], index: 5, kind: input, shape index: {}]
  %s6 = inlined_call_operand.vmem [shape: f32[1,128], index: 6, kind: input, shape index: {}]
  %s7 = inlined_call_operand.hbm [shape: f32[128,128], index: 7, kind: input, shape index: {}]
  %s8 = inlined_call_operand.vmem [shape: f32[1,128], index: 8, kind: input, shape index: {}]
  %s9 = inlined_call_operand.hbm [shape: f32[2,128], index: 9, kind: output, shape index: {}]
  %s10 = sld [smem:[#allocation0]]
  $region66: #{tpu_custom_call.1} parent=0
    _
  %s12 = ssub.s32 1, %s10
  %s13 = scalar_select 0, %s12, %s10
  $region1: #{tpu_custom_call.1} parent=0
    #allocation2 [shape = 'u8[8192]{0}', space=vmem, size = 0x2000, scoped, tag = 'input window, operand 0, single buffered']
    #allocation3 [shape = 's32[1]{0}', space=sflag, size = 0x4, scoped, tag = 'scoped memory for tpu_custom_call.1']
    #allocation4 [shape = 's32[1]{0}', space=sflag, size = 0x4, scoped, tag = 'scoped memory for tpu_custom_call.1']
    #allocation5 [shape = 'u8[524288]{0}', space=vmem, size = 0x80000, scoped, tag = 'input window, operand 1, single buffered']
    #allocation6 [shape = 's32[1]{0}', space=sflag, size = 0x4, scoped, tag = 'scoped memory for tpu_custom_call.1']
    #allocation7 [shape = 'u8[65536]{0}', space=vmem, size = 0x10000, scoped, tag = 'input window, operand 3, single buffered']
    #allocation8 [shape = 'u8[65536]{0}', space=vmem, size = 0x10000, scoped, tag = 'input window, operand 5, single buffered']
    #allocation9 [shape = 's32[1]{0}', space=sflag, size = 0x4, scoped, tag = 'scoped memory for tpu_custom_call.1']
    #allocation10 [shape = 'u8[65536]{0}', space=vmem, size = 0x10000, scoped, tag = 'input window, operand 7, single buffered']
    #allocation11 [shape = 'u8[1024]{0}', space=vmem, size = 0x400, scoped, tag = 'output window, operand 0, single buffered']
    %14 = vsyncpa [#allocation3], 0
    %15 = vsyncpa [#allocation6], 0
    %16 = vsyncpa [#allocation9], 0
    %17 = vsyncpa [#allocation4], 0
    // Predicated region
    $region2: #{tpu_custom_call.1} parent=1 // pred_check
      _
    $region3: #{tpu_custom_call.1} parent=1 // pred_check_branch
      %19 = sbr.rel (0) target = $region5
    $region4: #{tpu_custom_call.1} parent=1 // pred_region
      %s21 = ssub.s32 256, 256
      %22 = vsyncadd [#allocation3], %s21
      %s24 = sshll.u32 [#allocation2], 4
      %s25 = int_to_ptr.vmem [resolvable:$true] %s24
      %27 = dma.hbm_to_vmem [thread:$0]  %s0, 256, %s25, [#allocation3]
    $region5: #{tpu_custom_call.1} parent=1 // pred_fallthru
      _
    // Predicated region
    $region6: #{tpu_custom_call.1} parent=1 // pred_check
      _
    $region7: #{tpu_custom_call.1} parent=1 // pred_check_branch
      %29 = sbr.rel (0) target = $region9
    $region8: #{tpu_custom_call.1} parent=1 // pred_region
      %s31 = ssub.s32 16384, 16384
      %32 = vsyncadd [#allocation6], %s31
      %s33 = sshll.u32 [#allocation5], 4
      %s34 = int_to_ptr.vmem [resolvable:$true] %s33
      %39 = dma.hbm_to_vmem [thread:$0]  %s1, 16384, %s34, [#allocation6], 128, 128, 8
    $region9: #{tpu_custom_call.1} parent=1 // pred_fallthru
      _
    // Predicated region
    $region10: #{tpu_custom_call.1} parent=1 // pred_check
      _
    $region11: #{tpu_custom_call.1} parent=1 // pred_check_branch
      %41 = sbr.rel (0) target = $region13
    $region12: #{tpu_custom_call.1} parent=1 // pred_region
      _
    $region13: #{tpu_custom_call.1} parent=1 // pred_fallthru
      _
    // Predicated region
    $region14: #{tpu_custom_call.1} parent=1 // pred_check
      _
    $region15: #{tpu_custom_call.1} parent=1 // pred_check_branch
      %43 = sbr.rel (0) target = $region17
    $region16: #{tpu_custom_call.1} parent=1 // pred_region
      %s45 = ssub.s32 2048, 2048
      %46 = vsyncadd [#allocation6], %s45
      %s47 = sshll.u32 [#allocation7], 4
      %s48 = int_to_ptr.vmem [resolvable:$true] %s47
      %53 = dma.hbm_to_vmem [thread:$0]  %s3, 2048, %s48, [#allocation6], 128, 128, 8
    $region17: #{tpu_custom_call.1} parent=1 // pred_fallthru
      _
    // Predicated region
    $region18: #{tpu_custom_call.1} parent=1 // pred_check
      _
    $region19: #{tpu_custom_call.1} parent=1 // pred_check_branch
      %55 = sbr.rel (0) target = $region21
    $region20: #{tpu_custom_call.1} parent=1 // pred_region
      _
    $region21: #{tpu_custom_call.1} parent=1 // pred_fallthru
      _
    // Predicated region
    $region22: #{tpu_custom_call.1} parent=1 // pred_check
      _
    $region23: #{tpu_custom_call.1} parent=1 // pred_check_branch
      %57 = sbr.rel (0) target = $region25
    $region24: #{tpu_custom_call.1} parent=1 // pred_region
      %s59 = ssub.s32 2048, 2048
      %60 = vsyncadd [#allocation9], %s59
      %s61 = sshll.u32 [#allocation8], 4
      %s62 = int_to_ptr.vmem [resolvable:$true] %s61
      %67 = dma.hbm_to_vmem [thread:$0]  %s5, 2048, %s62, [#allocation9], 128, 128, 8
    $region25: #{tpu_custom_call.1} parent=1 // pred_fallthru
      _
    // Predicated region
    $region26: #{tpu_custom_call.1} parent=1 // pred_check
      _
    $region27: #{tpu_custom_call.1} parent=1 // pred_check_branch
      %69 = sbr.rel (0) target = $region29
    $region28: #{tpu_custom_call.1} parent=1 // pred_region
      _
    $region29: #{tpu_custom_call.1} parent=1 // pred_fallthru
      _
    // Predicated region
    $region30: #{tpu_custom_call.1} parent=1 // pred_check
      _
    $region31: #{tpu_custom_call.1} parent=1 // pred_check_branch
      %71 = sbr.rel (0) target = $region33
    $region32: #{tpu_custom_call.1} parent=1 // pred_region
      %s73 = ssub.s32 2048, 2048
      %74 = vsyncadd [#allocation9], %s73
      %s75 = sshll.u32 [#allocation10], 4
      %s76 = int_to_ptr.vmem [resolvable:$true] %s75
      %81 = dma.hbm_to_vmem [thread:$0]  %s7, 2048, %s76, [#allocation9], 128, 128, 8
    $region33: #{tpu_custom_call.1} parent=1 // pred_fallthru
      _
    // Predicated region
    $region34: #{tpu_custom_call.1} parent=1 // pred_check
      _
    $region35: #{tpu_custom_call.1} parent=1 // pred_check_branch
      %83 = sbr.rel (0) target = $region37
    $region36: #{tpu_custom_call.1} parent=1 // pred_region
      _
    $region37: #{tpu_custom_call.1} parent=1 // pred_fallthru
      _
    // Predicated region
    $region38: #{tpu_custom_call.1} parent=1 // pred_check
      _
    $region39: #{tpu_custom_call.1} parent=1 // pred_check_branch
      %85 = sbr.rel (0) target = $region41
    $region40: #{tpu_custom_call.1} parent=1 // pred_region
      %86 = dma.done [#allocation3], 256
    $region41: #{tpu_custom_call.1} parent=1 // pred_fallthru
      _
    // Predicated region
    $region42: #{tpu_custom_call.1} parent=1 // pred_check
      _
    $region43: #{tpu_custom_call.1} parent=1 // pred_check_branch
      %88 = sbr.rel (0) target = $region45
    $region44: #{tpu_custom_call.1} parent=1 // pred_region
      %89 = dma.done [#allocation6], 16384
    $region45: #{tpu_custom_call.1} parent=1 // pred_fallthru
      _
    // Predicated region
    $region46: #{tpu_custom_call.1} parent=1 // pred_check
      _
    $region47: #{tpu_custom_call.1} parent=1 // pred_check_branch
      %91 = sbr.rel (0) target = $region49
    $region48: #{tpu_custom_call.1} parent=1 // pred_region
      %92 = dma.done [#allocation6], 2048
    $region49: #{tpu_custom_call.1} parent=1 // pred_fallthru
      _
    // Predicated region
    $region50: #{tpu_custom_call.1} parent=1 // pred_check
      _
    $region51: #{tpu_custom_call.1} parent=1 // pred_check_branch
      %94 = sbr.rel (0) target = $region53
    $region52: #{tpu_custom_call.1} parent=1 // pred_region
      %95 = dma.done [#allocation9], 2048
    $region53: #{tpu_custom_call.1} parent=1 // pred_fallthru
      _
    // Predicated region
    $region54: #{tpu_custom_call.1} parent=1 // pred_check
      _
    $region55: #{tpu_custom_call.1} parent=1 // pred_check_branch
      %97 = sbr.rel (0) target = $region57
    $region56: #{tpu_custom_call.1} parent=1 // pred_region
      %98 = dma.done [#allocation9], 2048
    $region57: #{tpu_custom_call.1} parent=1 // pred_fallthru
      _
    %v99 = vld [vmem:[#allocation2] sm:$0xff]
    %v100 = vld [vmem:[#allocation2 + $0x8] sm:$0xff]
    %v101 = vld [vmem:[#allocation5] sm:$0xff]
    %v102 = vld [vmem:[#allocation5 + $0x8] sm:$0xff]
    %v103 = vld [vmem:[#allocation5 + $0x10] sm:$0xff]
    %v104 = vld [vmem:[#allocation5 + $0x18] sm:$0xff]
    %v105 = vld [vmem:[#allocation5 + $0x20] sm:$0xff]
    %v106 = vld [vmem:[#allocation5 + $0x28] sm:$0xff]
    %v107 = vld [vmem:[#allocation5 + $0x30] sm:$0xff]
    %v108 = vld [vmem:[#allocation5 + $0x38] sm:$0xff]
    %v109 = vld [vmem:[#allocation5 + $0x40] sm:$0xff]
    %v110 = vld [vmem:[#allocation5 + $0x48] sm:$0xff]
    %v111 = vld [vmem:[#allocation5 + $0x50] sm:$0xff]
    %v112 = vld [vmem:[#allocation5 + $0x58] sm:$0xff]
    %v113 = vld [vmem:[#allocation5 + $0x60] sm:$0xff]
    %v114 = vld [vmem:[#allocation5 + $0x68] sm:$0xff]
    %v115 = vld [vmem:[#allocation5 + $0x70] sm:$0xff]
    %v116 = vld [vmem:[#allocation5 + $0x78] sm:$0xff]
    %v117 = vld [vmem:[#allocation5 + $0x80] sm:$0xff]
    %v118 = vld [vmem:[#allocation5 + $0x88] sm:$0xff]
    %v119 = vld [vmem:[#allocation5 + $0x90] sm:$0xff]
    %v120 = vld [vmem:[#allocation5 + $0x98] sm:$0xff]
    %v121 = vld [vmem:[#allocation5 + $0xa0] sm:$0xff]
    %v122 = vld [vmem:[#allocation5 + $0xa8] sm:$0xff]
    %v123 = vld [vmem:[#allocation5 + $0xb0] sm:$0xff]
    %v124 = vld [vmem:[#allocation5 + $0xb8] sm:$0xff]
    %v125 = vld [vmem:[#allocation5 + $0xc0] sm:$0xff]
    %v126 = vld [vmem:[#allocation5 + $0xc8] sm:$0xff]
    %v127 = vld [vmem:[#allocation5 + $0xd0] sm:$0xff]
    %v128 = vld [vmem:[#allocation5 + $0xd8] sm:$0xff]
    %v129 = vld [vmem:[#allocation5 + $0xe0] sm:$0xff]
    %v130 = vld [vmem:[#allocation5 + $0xe8] sm:$0xff]
    %v131 = vld [vmem:[#allocation5 + $0xf0] sm:$0xff]
    %v132 = vld [vmem:[#allocation5 + $0xf8] sm:$0xff]
    %v133 = vld [vmem:[#allocation5 + $0x100] sm:$0xff]
    %v134 = vld [vmem:[#allocation5 + $0x108] sm:$0xff]
    %v135 = vld [vmem:[#allocation5 + $0x110] sm:$0xff]
    %v136 = vld [vmem:[#allocation5 + $0x118] sm:$0xff]
    %v137 = vld [vmem:[#allocation5 + $0x120] sm:$0xff]
    %v138 = vld [vmem:[#allocation5 + $0x128] sm:$0xff]
    %v139 = vld [vmem:[#allocation5 + $0x130] sm:$0xff]
    %v140 = vld [vmem:[#allocation5 + $0x138] sm:$0xff]
    %v141 = vld [vmem:[#allocation5 + $0x140] sm:$0xff]
    %v142 = vld [vmem:[#allocation5 + $0x148] sm:$0xff]
    %v143 = vld [vmem:[#allocation5 + $0x150] sm:$0xff]
    %v144 = vld [vmem:[#allocation5 + $0x158] sm:$0xff]
    %v145 = vld [vmem:[#allocation5 + $0x160] sm:$0xff]
    %v146 = vld [vmem:[#allocation5 + $0x168] sm:$0xff]
    %v147 = vld [vmem:[#allocation5 + $0x170] sm:$0xff]
    %v148 = vld [vmem:[#allocation5 + $0x178] sm:$0xff]
    %v149 = vld [vmem:[#allocation5 + $0x180] sm:$0xff]
    %v150 = vld [vmem:[#allocation5 + $0x188] sm:$0xff]
    %v151 = vld [vmem:[#allocation5 + $0x190] sm:$0xff]
    %v152 = vld [vmem:[#allocation5 + $0x198] sm:$0xff]
    %v153 = vld [vmem:[#allocation5 + $0x1a0] sm:$0xff]
    %v154 = vld [vmem:[#allocation5 + $0x1a8] sm:$0xff]
    %v155 = vld [vmem:[#allocation5 + $0x1b0] sm:$0xff]
    %v156 = vld [vmem:[#allocation5 + $0x1b8] sm:$0xff]
    %v157 = vld [vmem:[#allocation5 + $0x1c0] sm:$0xff]
    %v158 = vld [vmem:[#allocation5 + $0x1c8] sm:$0xff]
    %v159 = vld [vmem:[#allocation5 + $0x1d0] sm:$0xff]
    %v160 = vld [vmem:[#allocation5 + $0x1d8] sm:$0xff]
    %v161 = vld [vmem:[#allocation5 + $0x1e0] sm:$0xff]
    %v162 = vld [vmem:[#allocation5 + $0x1e8] sm:$0xff]
    %v163 = vld [vmem:[#allocation5 + $0x1f0] sm:$0xff]
    %v164 = vld [vmem:[#allocation5 + $0x1f8] sm:$0xff]
    %v165 = vld [vmem:[#allocation5 + $0x200] sm:$0xff]
    %v166 = vld [vmem:[#allocation5 + $0x208] sm:$0xff]
    %v167 = vld [vmem:[#allocation5 + $0x210] sm:$0xff]
    %v168 = vld [vmem:[#allocation5 + $0x218] sm:$0xff]
    %v169 = vld [vmem:[#allocation5 + $0x220] sm:$0xff]
    %v170 = vld [vmem:[#allocation5 + $0x228] sm:$0xff]
    %v171 = vld [vmem:[#allocation5 + $0x230] sm:$0xff]
    %v172 = vld [vmem:[#allocation5 + $0x238] sm:$0xff]
    %v173 = vld [vmem:[#allocation5 + $0x240] sm:$0xff]
    %v174 = vld [vmem:[#allocation5 + $0x248] sm:$0xff]
    %v175 = vld [vmem:[#allocation5 + $0x250] sm:$0xff]
    %v176 = vld [vmem:[#allocation5 + $0x258] sm:$0xff]
    %v177 = vld [vmem:[#allocation5 + $0x260] sm:$0xff]
    %v178 = vld [vmem:[#allocation5 + $0x268] sm:$0xff]
    %v179 = vld [vmem:[#allocation5 + $0x270] sm:$0xff]
    %v180 = vld [vmem:[#allocation5 + $0x278] sm:$0xff]
    %v181 = vld [vmem:[#allocation5 + $0x280] sm:$0xff]
    %v182 = vld [vmem:[#allocation5 + $0x288] sm:$0xff]
    %v183 = vld [vmem:[#allocation5 + $0x290] sm:$0xff]
    %v184 = vld [vmem:[#allocation5 + $0x298] sm:$0xff]
    %v185 = vld [vmem:[#allocation5 + $0x2a0] sm:$0xff]
    %v186 = vld [vmem:[#allocation5 + $0x2a8] sm:$0xff]
    %v187 = vld [vmem:[#allocation5 + $0x2b0] sm:$0xff]
    %v188 = vld [vmem:[#allocation5 + $0x2b8] sm:$0xff]
    %v189 = vld [vmem:[#allocation5 + $0x2c0] sm:$0xff]
    %v190 = vld [vmem:[#allocation5 + $0x2c8] sm:$0xff]
    %v191 = vld [vmem:[#allocation5 + $0x2d0] sm:$0xff]
    %v192 = vld [vmem:[#allocation5 + $0x2d8] sm:$0xff]
    %v193 = vld [vmem:[#allocation5 + $0x2e0] sm:$0xff]
    %v194 = vld [vmem:[#allocation5 + $0x2e8] sm:$0xff]
    %v195 = vld [vmem:[#allocation5 + $0x2f0] sm:$0xff]
    %v196 = vld [vmem:[#allocation5 + $0x2f8] sm:$0xff]
    %v197 = vld [vmem:[#allocation5 + $0x300] sm:$0xff]
    %v198 = vld [vmem:[#allocation5 + $0x308] sm:$0xff]
    %v199 = vld [vmem:[#allocation5 + $0x310] sm:$0xff]
    %v200 = vld [vmem:[#allocation5 + $0x318] sm:$0xff]
    %v201 = vld [vmem:[#allocation5 + $0x320] sm:$0xff]
    %v202 = vld [vmem:[#allocation5 + $0x328] sm:$0xff]
    %v203 = vld [vmem:[#allocation5 + $0x330] sm:$0xff]
    %v204 = vld [vmem:[#allocation5 + $0x338] sm:$0xff]
    %v205 = vld [vmem:[#allocation5 + $0x340] sm:$0xff]
    %v206 = vld [vmem:[#allocation5 + $0x348] sm:$0xff]
    %v207 = vld [vmem:[#allocation5 + $0x350] sm:$0xff]
    %v208 = vld [vmem:[#allocation5 + $0x358] sm:$0xff]
    %v209 = vld [vmem:[#allocation5 + $0x360] sm:$0xff]
    %v210 = vld [vmem:[#allocation5 + $0x368] sm:$0xff]
    %v211 = vld [vmem:[#allocation5 + $0x370] sm:$0xff]
    %v212 = vld [vmem:[#allocation5 + $0x378] sm:$0xff]
    %v213 = vld [vmem:[#allocation5 + $0x380] sm:$0xff]
    %v214 = vld [vmem:[#allocation5 + $0x388] sm:$0xff]
    %v215 = vld [vmem:[#allocation5 + $0x390] sm:$0xff]
    %v216 = vld [vmem:[#allocation5 + $0x398] sm:$0xff]
    %v217 = vld [vmem:[#allocation5 + $0x3a0] sm:$0xff]
    %v218 = vld [vmem:[#allocation5 + $0x3a8] sm:$0xff]
    %v219 = vld [vmem:[#allocation5 + $0x3b0] sm:$0xff]
    %v220 = vld [vmem:[#allocation5 + $0x3b8] sm:$0xff]
    %v221 = vld [vmem:[#allocation5 + $0x3c0] sm:$0xff]
    %v222 = vld [vmem:[#allocation5 + $0x3c8] sm:$0xff]
    %v223 = vld [vmem:[#allocation5 + $0x3d0] sm:$0xff]
    %v224 = vld [vmem:[#allocation5 + $0x3d8] sm:$0xff]
    %v225 = vld [vmem:[#allocation5 + $0x3e0] sm:$0xff]
    %v226 = vld [vmem:[#allocation5 + $0x3e8] sm:$0xff]
    %v227 = vld [vmem:[#allocation5 + $0x3f0] sm:$0xff]
    %v228 = vld [vmem:[#allocation5 + $0x3f8] sm:$0xff]
    %v229 = vld [vmem:[%s2] sm:$0x1]
    %v231 = vlaneseq
    %v232 = vshrl.u32 %v231, 7
    %v233 = vsub.s32 0, %v232
    %v234 = vrot.slane %v229, %v233
    %v238 = vcombine.high %v99, %v99
    %v240 = vunpack.c.l.s4 1983009808
    %v241 = vunpack.c.0.s8 %v240
    %v242 = vlaneseq
    %v243 = vshrl.u32 %v242, 7
    %v244 = vsub.s32 %v241, %v243
    %v245 = vrot.slane %v99, %v244
    %v247 = vunpack.c.l.s4 1983009808
    %v248 = vunpack.c.0.s8 %v247
    %v249 = vlaneseq
    %v250 = vshrl.u32 %v249, 7
    %v251 = vsub.s32 %v248, %v250
    %v252 = vrot.slane %v238, %v251
    %v253 = vcombine.high %v245, %v245
    %v254 = vcombine.high %v252, %v252
    %v255 = vcombine.high %v100, %v100
    %v257 = vunpack.c.l.s4 1983009808
    %v258 = vunpack.c.0.s8 %v257
    %v259 = vlaneseq
    %v260 = vshrl.u32 %v259, 7
    %v261 = vsub.s32 %v258, %v260
    %v262 = vrot.slane %v100, %v261
    %v264 = vunpack.c.l.s4 1983009808
    %v265 = vunpack.c.0.s8 %v264
    %v266 = vlaneseq
    %v267 = vshrl.u32 %v266, 7
    %v268 = vsub.s32 %v265, %v267
    %v269 = vrot.slane %v255, %v268
    %v270 = vcombine.high %v262, %v262
    %v271 = vcombine.high %v269, %v269
    %280 = vmatprep.subr.mxu0 0.0
    %281 = vmatpush1.msra.mxu0 %v116
    %282 = vmatprep.subr.mxu0 0.0
    %283 = vmatpush1.msra.mxu0 %v115
    %284 = vmatprep.subr.mxu0 0.0
    %285 = vmatpush1.msra.mxu0 %v114
    %286 = vmatprep.subr.mxu0 0.0
    %287 = vmatpush1.msra.mxu0 %v113
    %288 = vmatprep.subr.mxu0 0.0
    %289 = vmatpush1.msra.mxu0 %v112
    %290 = vmatprep.subr.mxu0 0.0
    %291 = vmatpush1.msra.mxu0 %v111
    %292 = vmatprep.subr.mxu0 0.0
    %293 = vmatpush1.msra.mxu0 %v110
    %294 = vmatprep.subr.mxu0 0.0
    %295 = vmatpush1.msra.mxu0 %v109
    %296 = vmatprep.subr.mxu0 0.0
    %297 = vmatpush1.msra.mxu0 %v108
    %298 = vmatprep.subr.mxu0 0.0
    %299 = vmatpush1.msra.mxu0 %v107
    %300 = vmatprep.subr.mxu0 0.0
    %301 = vmatpush1.msra.mxu0 %v106
    %302 = vmatprep.subr.mxu0 0.0
    %303 = vmatpush1.msra.mxu0 %v105
    %304 = vmatprep.subr.mxu0 0.0
    %305 = vmatpush1.msra.mxu0 %v104
    %306 = vmatprep.subr.mxu0 0.0
    %307 = vmatpush1.msra.mxu0 %v103
    %308 = vmatprep.subr.mxu0 0.0
    %309 = vmatpush1.msra.mxu0 %v102
    %310 = vmatprep.subr.mxu0 0.0
    %311 = vmatpush1.msra.mxu0 %v101
    %312 = vmatprep.subr.mxu0 0.0
    %313 = vmatpush2.msra.mxu0 %v132
    %314 = vmatprep.subr.mxu0 0.0
    %315 = vmatpush2.msra.mxu0 %v131
    %316 = vmatprep.subr.mxu0 0.0
    %317 = vmatpush2.msra.mxu0 %v130
    %318 = vmatprep.subr.mxu0 0.0
    %319 = vmatpush2.msra.mxu0 %v129
    %320 = vmatprep.subr.mxu0 0.0
    %321 = vmatpush2.msra.mxu0 %v128
    %322 = vmatprep.subr.mxu0 0.0
    %323 = vmatpush2.msra.mxu0 %v127
    %324 = vmatprep.subr.mxu0 0.0
    %325 = vmatpush2.msra.mxu0 %v126
    %326 = vmatprep.subr.mxu0 0.0
    %327 = vmatpush2.msra.mxu0 %v125
    %328 = vmatprep.subr.mxu0 0.0
    %329 = vmatpush2.msra.mxu0 %v124
    %330 = vmatprep.subr.mxu0 0.0
    %331 = vmatpush2.msra.mxu0 %v123
    %332 = vmatprep.subr.mxu0 0.0
    %333 = vmatpush2.msra.mxu0 %v122
    %334 = vmatprep.subr.mxu0 0.0
    %335 = vmatpush2.msra.mxu0 %v121
    %336 = vmatprep.subr.mxu0 0.0
    %337 = vmatpush2.msra.mxu0 %v120
    %338 = vmatprep.subr.mxu0 0.0
    %339 = vmatpush2.msra.mxu0 %v119
    %340 = vmatprep.subr.mxu0 0.0
    %341 = vmatpush2.msra.mxu0 %v118
    %342 = vmatprep.subr.mxu0 0.0
    %343 = vmatpush2.msra.mxu0 %v117
    %344 = vmatprep.mubr.f32.mxu0 %v253
    %345 = vmatmul.mubr.f32.gmra.mxu0 %v245
    %v346 = vpop.f32.mrf.mxu0
    %v347 = vadd.f32 %v234, %v346
    %v348 = vpop.f32.mrf.mxu0
    %349 = vdwg.mxu0
    %350 = vmatprep.subr.mxu0 0.0
    %351 = vmatpush1.msra.mxu0 %v148
    %352 = vmatprep.subr.mxu0 0.0
    %353 = vmatpush1.msra.mxu0 %v147
    %354 = vmatprep.subr.mxu0 0.0
    %355 = vmatpush1.msra.mxu0 %v146
    %356 = vmatprep.subr.mxu0 0.0
    %357 = vmatpush1.msra.mxu0 %v145
    %358 = vmatprep.subr.mxu0 0.0
    %359 = vmatpush1.msra.mxu0 %v144
    %360 = vmatprep.subr.mxu0 0.0
    %361 = vmatpush1.msra.mxu0 %v143
    %362 = vmatprep.subr.mxu0 0.0
    %363 = vmatpush1.msra.mxu0 %v142
    %364 = vmatprep.subr.mxu0 0.0
    %365 = vmatpush1.msra.mxu0 %v141
    %366 = vmatprep.subr.mxu0 0.0
    %367 = vmatpush1.msra.mxu0 %v140
    %368 = vmatprep.subr.mxu0 0.0
    %369 = vmatpush1.msra.mxu0 %v139
    %370 = vmatprep.subr.mxu0 0.0
    %371 = vmatpush1.msra.mxu0 %v138
    %372 = vmatprep.subr.mxu0 0.0
    %373 = vmatpush1.msra.mxu0 %v137
    %374 = vmatprep.subr.mxu0 0.0
    %375 = vmatpush1.msra.mxu0 %v136
    %376 = vmatprep.subr.mxu0 0.0
    %377 = vmatpush1.msra.mxu0 %v135
    %378 = vmatprep.subr.mxu0 0.0
    %379 = vmatpush1.msra.mxu0 %v134
    %380 = vmatprep.subr.mxu0 0.0
    %381 = vmatpush1.msra.mxu0 %v133
    %382 = vmatprep.subr.mxu0 0.0
    %383 = vmatpush2.msra.mxu0 %v164
    %384 = vmatprep.subr.mxu0 0.0
    %385 = vmatpush2.msra.mxu0 %v163
    %386 = vmatprep.subr.mxu0 0.0
    %387 = vmatpush2.msra.mxu0 %v162
    %388 = vmatprep.subr.mxu0 0.0
    %389 = vmatpush2.msra.mxu0 %v161
    %390 = vmatprep.subr.mxu0 0.0
    %391 = vmatpush2.msra.mxu0 %v160
    %392 = vmatprep.subr.mxu0 0.0
    %393 = vmatpush2.msra.mxu0 %v159
    %394 = vmatprep.subr.mxu0 0.0
    %395 = vmatpush2.msra.mxu0 %v158
    %396 = vmatprep.subr.mxu0 0.0
    %397 = vmatpush2.msra.mxu0 %v157
    %398 = vmatprep.subr.mxu0 0.0
    %399 = vmatpush2.msra.mxu0 %v156
    %400 = vmatprep.subr.mxu0 0.0
    %401 = vmatpush2.msra.mxu0 %v155
    %402 = vmatprep.subr.mxu0 0.0
    %403 = vmatpush2.msra.mxu0 %v154
    %404 = vmatprep.subr.mxu0 0.0
    %405 = vmatpush2.msra.mxu0 %v153
    %406 = vmatprep.subr.mxu0 0.0
    %407 = vmatpush2.msra.mxu0 %v152
    %408 = vmatprep.subr.mxu0 0.0
    %409 = vmatpush2.msra.mxu0 %v151
    %410 = vmatprep.subr.mxu0 0.0
    %411 = vmatpush2.msra.mxu0 %v150
    %412 = vmatprep.subr.mxu0 0.0
    %413 = vmatpush2.msra.mxu0 %v149
    %414 = vmatprep.mubr.f32.mxu0 %v254
    %415 = vmatmul.mubr.f32.gmra.mxu0 %v252
    %v416 = vpop.f32.mrf.mxu0
    %v417 = vadd.f32 %v347, %v416
    %v418 = vpop.f32.mrf.mxu0
    %419 = vdwg.mxu0
    %420 = vmatprep.subr.mxu0 0.0
    %421 = vmatpush1.msra.mxu0 %v180
    %422 = vmatprep.subr.mxu0 0.0
    %423 = vmatpush1.msra.mxu0 %v179
    %424 = vmatprep.subr.mxu0 0.0
    %425 = vmatpush1.msra.mxu0 %v178
    %426 = vmatprep.subr.mxu0 0.0
    %427 = vmatpush1.msra.mxu0 %v177
    %428 = vmatprep.subr.mxu0 0.0
    %429 = vmatpush1.msra.mxu0 %v176
    %430 = vmatprep.subr.mxu0 0.0
    %431 = vmatpush1.msra.mxu0 %v175
    %432 = vmatprep.subr.mxu0 0.0
    %433 = vmatpush1.msra.mxu0 %v174
    %434 = vmatprep.subr.mxu0 0.0
    %435 = vmatpush1.msra.mxu0 %v173
    %436 = vmatprep.subr.mxu0 0.0
    %437 = vmatpush1.msra.mxu0 %v172
    %438 = vmatprep.subr.mxu0 0.0
    %439 = vmatpush1.msra.mxu0 %v171
    %440 = vmatprep.subr.mxu0 0.0
    %441 = vmatpush1.msra.mxu0 %v170
    %442 = vmatprep.subr.mxu0 0.0
    %443 = vmatpush1.msra.mxu0 %v169
    %444 = vmatprep.subr.mxu0 0.0
    %445 = vmatpush1.msra.mxu0 %v168
    %446 = vmatprep.subr.mxu0 0.0
    %447 = vmatpush1.msra.mxu0 %v167
    %448 = vmatprep.subr.mxu0 0.0
    %449 = vmatpush1.msra.mxu0 %v166
    %450 = vmatprep.subr.mxu0 0.0
    %451 = vmatpush1.msra.mxu0 %v165
    %452 = vmatprep.subr.mxu0 0.0
    %453 = vmatpush2.msra.mxu0 %v196
    %454 = vmatprep.subr.mxu0 0.0
    %455 = vmatpush2.msra.mxu0 %v195
    %456 = vmatprep.subr.mxu0 0.0
    %457 = vmatpush2.msra.mxu0 %v194
    %458 = vmatprep.subr.mxu0 0.0
    %459 = vmatpush2.msra.mxu0 %v193
    %460 = vmatprep.subr.mxu0 0.0
    %461 = vmatpush2.msra.mxu0 %v192
    %462 = vmatprep.subr.mxu0 0.0
    %463 = vmatpush2.msra.mxu0 %v191
    %464 = vmatprep.subr.mxu0 0.0
    %465 = vmatpush2.msra.mxu0 %v190
    %466 = vmatprep.subr.mxu0 0.0
    %467 = vmatpush2.msra.mxu0 %v189
    %468 = vmatprep.subr.mxu0 0.0
    %469 = vmatpush2.msra.mxu0 %v188
    %470 = vmatprep.subr.mxu0 0.0
    %471 = vmatpush2.msra.mxu0 %v187
    %472 = vmatprep.subr.mxu0 0.0
    %473 = vmatpush2.msra.mxu0 %v186
    %474 = vmatprep.subr.mxu0 0.0
    %475 = vmatpush2.msra.mxu0 %v185
    %476 = vmatprep.subr.mxu0 0.0
    %477 = vmatpush2.msra.mxu0 %v184
    %478 = vmatprep.subr.mxu0 0.0
    %479 = vmatpush2.msra.mxu0 %v183
    %480 = vmatprep.subr.mxu0 0.0
    %481 = vmatpush2.msra.mxu0 %v182
    %482 = vmatprep.subr.mxu0 0.0
    %483 = vmatpush2.msra.mxu0 %v181
    %484 = vmatprep.mubr.f32.mxu0 %v270
    %485 = vmatmul.mubr.f32.gmra.mxu0 %v262
    %v486 = vpop.f32.mrf.mxu0
    %v487 = vadd.f32 %v417, %v486
    %v488 = vpop.f32.mrf.mxu0
    %489 = vdwg.mxu0
    %490 = vmatprep.subr.mxu0 0.0
    %491 = vmatpush1.msra.mxu0 %v212
    %492 = vmatprep.subr.mxu0 0.0
    %493 = vmatpush1.msra.mxu0 %v211
    %494 = vmatprep.subr.mxu0 0.0
    %495 = vmatpush1.msra.mxu0 %v210
    %496 = vmatprep.subr.mxu0 0.0
    %497 = vmatpush1.msra.mxu0 %v209
    %498 = vmatprep.subr.mxu0 0.0
    %499 = vmatpush1.msra.mxu0 %v208
    %500 = vmatprep.subr.mxu0 0.0
    %501 = vmatpush1.msra.mxu0 %v207
    %502 = vmatprep.subr.mxu0 0.0
    %503 = vmatpush1.msra.mxu0 %v206
    %504 = vmatprep.subr.mxu0 0.0
    %505 = vmatpush1.msra.mxu0 %v205
    %506 = vmatprep.subr.mxu0 0.0
    %507 = vmatpush1.msra.mxu0 %v204
    %508 = vmatprep.subr.mxu0 0.0
    %509 = vmatpush1.msra.mxu0 %v203
    %510 = vmatprep.subr.mxu0 0.0
    %511 = vmatpush1.msra.mxu0 %v202
    %512 = vmatprep.subr.mxu0 0.0
    %513 = vmatpush1.msra.mxu0 %v201
    %514 = vmatprep.subr.mxu0 0.0
    %515 = vmatpush1.msra.mxu0 %v200
    %516 = vmatprep.subr.mxu0 0.0
    %517 = vmatpush1.msra.mxu0 %v199
    %518 = vmatprep.subr.mxu0 0.0
    %519 = vmatpush1.msra.mxu0 %v198
    %520 = vmatprep.subr.mxu0 0.0
    %521 = vmatpush1.msra.mxu0 %v197
    %522 = vmatprep.subr.mxu0 0.0
    %523 = vmatpush2.msra.mxu0 %v228
    %524 = vmatprep.subr.mxu0 0.0
    %525 = vmatpush2.msra.mxu0 %v227
    %526 = vmatprep.subr.mxu0 0.0
    %527 = vmatpush2.msra.mxu0 %v226
    %528 = vmatprep.subr.mxu0 0.0
    %529 = vmatpush2.msra.mxu0 %v225
    %530 = vmatprep.subr.mxu0 0.0
    %531 = vmatpush2.msra.mxu0 %v224
    %532 = vmatprep.subr.mxu0 0.0
    %533 = vmatpush2.msra.mxu0 %v223
    %534 = vmatprep.subr.mxu0 0.0
    %535 = vmatpush2.msra.mxu0 %v222
    %536 = vmatprep.subr.mxu0 0.0
    %537 = vmatpush2.msra.mxu0 %v221
    %538 = vmatprep.subr.mxu0 0.0
    %539 = vmatpush2.msra.mxu0 %v220
    %540 = vmatprep.subr.mxu0 0.0
    %541 = vmatpush2.msra.mxu0 %v219
    %542 = vmatprep.subr.mxu0 0.0
    %543 = vmatpush2.msra.mxu0 %v218
    %544 = vmatprep.subr.mxu0 0.0
    %545 = vmatpush2.msra.mxu0 %v217
    %546 = vmatprep.subr.mxu0 0.0
    %547 = vmatpush2.msra.mxu0 %v216
    %548 = vmatprep.subr.mxu0 0.0
    %549 = vmatpush2.msra.mxu0 %v215
    %550 = vmatprep.subr.mxu0 0.0
    %551 = vmatpush2.msra.mxu0 %v214
    %552 = vmatprep.subr.mxu0 0.0
    %553 = vmatpush2.msra.mxu0 %v213
    %554 = vmatprep.mubr.f32.mxu0 %v271
    %555 = vmatmul.mubr.f32.gmra.mxu0 %v269
    %v556 = vpop.f32.mrf.mxu0
    %v557 = vadd.f32 %v487, %v556
    %v558 = vpop.f32.mrf.mxu0
    %559 = vdwg.mxu0
    %v560 = vmax.f32 %v557, 0.0
    %v561 = vld [vmem:[#allocation7] sm:$0xff]
    %v562 = vld [vmem:[#allocation7 + $0x8] sm:$0xff]
    %v563 = vld [vmem:[#allocation7 + $0x10] sm:$0xff]
    %v564 = vld [vmem:[#allocation7 + $0x18] sm:$0xff]
    %v565 = vld [vmem:[#allocation7 + $0x20] sm:$0xff]
    %v566 = vld [vmem:[#allocation7 + $0x28] sm:$0xff]
    %v567 = vld [vmem:[#allocation7 + $0x30] sm:$0xff]
    %v568 = vld [vmem:[#allocation7 + $0x38] sm:$0xff]
    %v569 = vld [vmem:[#allocation7 + $0x40] sm:$0xff]
    %v570 = vld [vmem:[#allocation7 + $0x48] sm:$0xff]
    %v571 = vld [vmem:[#allocation7 + $0x50] sm:$0xff]
    %v572 = vld [vmem:[#allocation7 + $0x58] sm:$0xff]
    %v573 = vld [vmem:[#allocation7 + $0x60] sm:$0xff]
    %v574 = vld [vmem:[#allocation7 + $0x68] sm:$0xff]
    %v575 = vld [vmem:[#allocation7 + $0x70] sm:$0xff]
    %v576 = vld [vmem:[#allocation7 + $0x78] sm:$0xff]
    %v577 = vld [vmem:[%s4] sm:$0x1]
    %v579 = vlaneseq
    %v580 = vshrl.u32 %v579, 7
    %v581 = vsub.s32 0, %v580
    %v582 = vrot.slane %v577, %v581
    %584 = vmatprep.subr.mxu0 0.0
    %585 = vmatpush1.msra.mxu0 %v576
    %586 = vmatprep.subr.mxu0 0.0
    %587 = vmatpush1.msra.mxu0 %v575
    %588 = vmatprep.subr.mxu0 0.0
    %589 = vmatpush1.msra.mxu0 %v574
    %590 = vmatprep.subr.mxu0 0.0
    %591 = vmatpush1.msra.mxu0 %v573
    %592 = vmatprep.subr.mxu0 0.0
    %593 = vmatpush1.msra.mxu0 %v572
    %594 = vmatprep.subr.mxu0 0.0
    %595 = vmatpush1.msra.mxu0 %v571
    %596 = vmatprep.subr.mxu0 0.0
    %597 = vmatpush1.msra.mxu0 %v570
    %598 = vmatprep.subr.mxu0 0.0
    %599 = vmatpush1.msra.mxu0 %v569
    %600 = vmatprep.subr.mxu0 0.0
    %601 = vmatpush1.msra.mxu0 %v568
    %602 = vmatprep.subr.mxu0 0.0
    %603 = vmatpush1.msra.mxu0 %v567
    %604 = vmatprep.subr.mxu0 0.0
    %605 = vmatpush1.msra.mxu0 %v566
    %606 = vmatprep.subr.mxu0 0.0
    %607 = vmatpush1.msra.mxu0 %v565
    %608 = vmatprep.subr.mxu0 0.0
    %609 = vmatpush1.msra.mxu0 %v564
    %610 = vmatprep.subr.mxu0 0.0
    %611 = vmatpush1.msra.mxu0 %v563
    %612 = vmatprep.subr.mxu0 0.0
    %613 = vmatpush1.msra.mxu0 %v562
    %614 = vmatprep.subr.mxu0 0.0
    %615 = vmatpush1.msra.mxu0 %v561
    %616 = vmatprep.subr.mxu0 0.0
    %617 = vmatpush2.msra.mxu0 0.0
    %618 = vmatprep.subr.mxu0 0.0
    %619 = vmatpush2.msra.mxu0 0.0
    %620 = vmatprep.subr.mxu0 0.0
    %621 = vmatpush2.msra.mxu0 0.0
    %622 = vmatprep.subr.mxu0 0.0
    %623 = vmatpush2.msra.mxu0 0.0
    %624 = vmatprep.subr.mxu0 0.0
    %625 = vmatpush2.msra.mxu0 0.0
    %626 = vmatprep.subr.mxu0 0.0
    %627 = vmatpush2.msra.mxu0 0.0
    %628 = vmatprep.subr.mxu0 0.0
    %629 = vmatpush2.msra.mxu0 0.0
    %630 = vmatprep.subr.mxu0 0.0
    %631 = vmatpush2.msra.mxu0 0.0
    %632 = vmatprep.subr.mxu0 0.0
    %633 = vmatpush2.msra.mxu0 0.0
    %634 = vmatprep.subr.mxu0 0.0
    %635 = vmatpush2.msra.mxu0 0.0
    %636 = vmatprep.subr.mxu0 0.0
    %637 = vmatpush2.msra.mxu0 0.0
    %638 = vmatprep.subr.mxu0 0.0
    %639 = vmatpush2.msra.mxu0 0.0
    %640 = vmatprep.subr.mxu0 0.0
    %641 = vmatpush2.msra.mxu0 0.0
    %642 = vmatprep.subr.mxu0 0.0
    %643 = vmatpush2.msra.mxu0 0.0
    %644 = vmatprep.subr.mxu0 0.0
    %645 = vmatpush2.msra.mxu0 0.0
    %646 = vmatprep.subr.mxu0 0.0
    %647 = vmatpush2.msra.mxu0 0.0
    %648 = vmatprep.mubr.f32.mxu0 0.0
    %649 = vmatmul.mubr.f32.gmra.mxu0 %v560
    %v650 = vpop.f32.mrf.mxu0
    %v651 = vadd.f32 %v582, %v650
    %v652 = vpop.f32.mrf.mxu0
    %653 = vdwg.mxu0
    %v654 = vld [vmem:[#allocation8] sm:$0xff]
    %v655 = vld [vmem:[#allocation8 + $0x8] sm:$0xff]
    %v656 = vld [vmem:[#allocation8 + $0x10] sm:$0xff]
    %v657 = vld [vmem:[#allocation8 + $0x18] sm:$0xff]
    %v658 = vld [vmem:[#allocation8 + $0x20] sm:$0xff]
    %v659 = vld [vmem:[#allocation8 + $0x28] sm:$0xff]
    %v660 = vld [vmem:[#allocation8 + $0x30] sm:$0xff]
    %v661 = vld [vmem:[#allocation8 + $0x38] sm:$0xff]
    %v662 = vld [vmem:[#allocation8 + $0x40] sm:$0xff]
    %v663 = vld [vmem:[#allocation8 + $0x48] sm:$0xff]
    %v664 = vld [vmem:[#allocation8 + $0x50] sm:$0xff]
    %v665 = vld [vmem:[#allocation8 + $0x58] sm:$0xff]
    %v666 = vld [vmem:[#allocation8 + $0x60] sm:$0xff]
    %v667 = vld [vmem:[#allocation8 + $0x68] sm:$0xff]
    %v668 = vld [vmem:[#allocation8 + $0x70] sm:$0xff]
    %v669 = vld [vmem:[#allocation8 + $0x78] sm:$0xff]
    %v670 = vld [vmem:[%s6] sm:$0x1]
    %v672 = vlaneseq
    %v673 = vshrl.u32 %v672, 7
    %v674 = vsub.s32 0, %v673
    %v675 = vrot.slane %v670, %v674
    %677 = vmatprep.subr.mxu0 0.0
    %678 = vmatpush1.msra.mxu0 %v669
    %679 = vmatprep.subr.mxu0 0.0
    %680 = vmatpush1.msra.mxu0 %v668
    %681 = vmatprep.subr.mxu0 0.0
    %682 = vmatpush1.msra.mxu0 %v667
    %683 = vmatprep.subr.mxu0 0.0
    %684 = vmatpush1.msra.mxu0 %v666
    %685 = vmatprep.subr.mxu0 0.0
    %686 = vmatpush1.msra.mxu0 %v665
    %687 = vmatprep.subr.mxu0 0.0
    %688 = vmatpush1.msra.mxu0 %v664
    %689 = vmatprep.subr.mxu0 0.0
    %690 = vmatpush1.msra.mxu0 %v663
    %691 = vmatprep.subr.mxu0 0.0
    %692 = vmatpush1.msra.mxu0 %v662
    %693 = vmatprep.subr.mxu0 0.0
    %694 = vmatpush1.msra.mxu0 %v661
    %695 = vmatprep.subr.mxu0 0.0
    %696 = vmatpush1.msra.mxu0 %v660
    %697 = vmatprep.subr.mxu0 0.0
    %698 = vmatpush1.msra.mxu0 %v659
    %699 = vmatprep.subr.mxu0 0.0
    %700 = vmatpush1.msra.mxu0 %v658
    %701 = vmatprep.subr.mxu0 0.0
    %702 = vmatpush1.msra.mxu0 %v657
    %703 = vmatprep.subr.mxu0 0.0
    %704 = vmatpush1.msra.mxu0 %v656
    %705 = vmatprep.subr.mxu0 0.0
    %706 = vmatpush1.msra.mxu0 %v655
    %707 = vmatprep.subr.mxu0 0.0
    %708 = vmatpush1.msra.mxu0 %v654
    %709 = vmatprep.subr.mxu0 0.0
    %710 = vmatpush2.msra.mxu0 0.0
    %711 = vmatprep.subr.mxu0 0.0
    %712 = vmatpush2.msra.mxu0 0.0
    %713 = vmatprep.subr.mxu0 0.0
    %714 = vmatpush2.msra.mxu0 0.0
    %715 = vmatprep.subr.mxu0 0.0
    %716 = vmatpush2.msra.mxu0 0.0
    %717 = vmatprep.subr.mxu0 0.0
    %718 = vmatpush2.msra.mxu0 0.0
    %719 = vmatprep.subr.mxu0 0.0
    %720 = vmatpush2.msra.mxu0 0.0
    %721 = vmatprep.subr.mxu0 0.0
    %722 = vmatpush2.msra.mxu0 0.0
    %723 = vmatprep.subr.mxu0 0.0
    %724 = vmatpush2.msra.mxu0 0.0
    %725 = vmatprep.subr.mxu0 0.0
    %726 = vmatpush2.msra.mxu0 0.0
    %727 = vmatprep.subr.mxu0 0.0
    %728 = vmatpush2.msra.mxu0 0.0
    %729 = vmatprep.subr.mxu0 0.0
    %730 = vmatpush2.msra.mxu0 0.0
    %731 = vmatprep.subr.mxu0 0.0
    %732 = vmatpush2.msra.mxu0 0.0
    %733 = vmatprep.subr.mxu0 0.0
    %734 = vmatpush2.msra.mxu0 0.0
    %735 = vmatprep.subr.mxu0 0.0
    %736 = vmatpush2.msra.mxu0 0.0
    %737 = vmatprep.subr.mxu0 0.0
    %738 = vmatpush2.msra.mxu0 0.0
    %739 = vmatprep.subr.mxu0 0.0
    %740 = vmatpush2.msra.mxu0 0.0
    %741 = vmatprep.mubr.f32.mxu0 0.0
    %742 = vmatmul.mubr.f32.gmra.mxu0 %v651
    %v743 = vpop.f32.mrf.mxu0
    %v744 = vadd.f32 %v675, %v743
    %v745 = vpop.f32.mrf.mxu0
    %746 = vdwg.mxu0
    %v747 = vmax.f32 %v744, 0.0
    %v748 = vld [vmem:[#allocation10] sm:$0xff]
    %v749 = vld [vmem:[#allocation10 + $0x8] sm:$0xff]
    %v750 = vld [vmem:[#allocation10 + $0x10] sm:$0xff]
    %v751 = vld [vmem:[#allocation10 + $0x18] sm:$0xff]
    %v752 = vld [vmem:[#allocation10 + $0x20] sm:$0xff]
    %v753 = vld [vmem:[#allocation10 + $0x28] sm:$0xff]
    %v754 = vld [vmem:[#allocation10 + $0x30] sm:$0xff]
    %v755 = vld [vmem:[#allocation10 + $0x38] sm:$0xff]
    %v756 = vld [vmem:[#allocation10 + $0x40] sm:$0xff]
    %v757 = vld [vmem:[#allocation10 + $0x48] sm:$0xff]
    %v758 = vld [vmem:[#allocation10 + $0x50] sm:$0xff]
    %v759 = vld [vmem:[#allocation10 + $0x58] sm:$0xff]
    %v760 = vld [vmem:[#allocation10 + $0x60] sm:$0xff]
    %v761 = vld [vmem:[#allocation10 + $0x68] sm:$0xff]
    %v762 = vld [vmem:[#allocation10 + $0x70] sm:$0xff]
    %v763 = vld [vmem:[#allocation10 + $0x78] sm:$0xff]
    %v764 = vld [vmem:[%s8] sm:$0x1]
    %v766 = vlaneseq
    %v767 = vshrl.u32 %v766, 7
    %v768 = vsub.s32 0, %v767
    %v769 = vrot.slane %v764, %v768
    %771 = vmatprep.subr.mxu0 0.0
    %772 = vmatpush1.msra.mxu0 %v763
    %773 = vmatprep.subr.mxu0 0.0
    %774 = vmatpush1.msra.mxu0 %v762
    %775 = vmatprep.subr.mxu0 0.0
    %776 = vmatpush1.msra.mxu0 %v761
    %777 = vmatprep.subr.mxu0 0.0
    %778 = vmatpush1.msra.mxu0 %v760
    %779 = vmatprep.subr.mxu0 0.0
    %780 = vmatpush1.msra.mxu0 %v759
    %781 = vmatprep.subr.mxu0 0.0
    %782 = vmatpush1.msra.mxu0 %v758
    %783 = vmatprep.subr.mxu0 0.0
    %784 = vmatpush1.msra.mxu0 %v757
    %785 = vmatprep.subr.mxu0 0.0
    %786 = vmatpush1.msra.mxu0 %v756
    %787 = vmatprep.subr.mxu0 0.0
    %788 = vmatpush1.msra.mxu0 %v755
    %789 = vmatprep.subr.mxu0 0.0
    %790 = vmatpush1.msra.mxu0 %v754
    %791 = vmatprep.subr.mxu0 0.0
    %792 = vmatpush1.msra.mxu0 %v753
    %793 = vmatprep.subr.mxu0 0.0
    %794 = vmatpush1.msra.mxu0 %v752
    %795 = vmatprep.subr.mxu0 0.0
    %796 = vmatpush1.msra.mxu0 %v751
    %797 = vmatprep.subr.mxu0 0.0
    %798 = vmatpush1.msra.mxu0 %v750
    %799 = vmatprep.subr.mxu0 0.0
    %800 = vmatpush1.msra.mxu0 %v749
    %801 = vmatprep.subr.mxu0 0.0
    %802 = vmatpush1.msra.mxu0 %v748
    %803 = vmatprep.subr.mxu0 0.0
    %804 = vmatpush2.msra.mxu0 0.0
    %805 = vmatprep.subr.mxu0 0.0
    %806 = vmatpush2.msra.mxu0 0.0
    %807 = vmatprep.subr.mxu0 0.0
    %808 = vmatpush2.msra.mxu0 0.0
    %809 = vmatprep.subr.mxu0 0.0
    %810 = vmatpush2.msra.mxu0 0.0
    %811 = vmatprep.subr.mxu0 0.0
    %812 = vmatpush2.msra.mxu0 0.0
    %813 = vmatprep.subr.mxu0 0.0
    %814 = vmatpush2.msra.mxu0 0.0
    %815 = vmatprep.subr.mxu0 0.0
    %816 = vmatpush2.msra.mxu0 0.0
    %817 = vmatprep.subr.mxu0 0.0
    %818 = vmatpush2.msra.mxu0 0.0
    %819 = vmatprep.subr.mxu0 0.0
    %820 = vmatpush2.msra.mxu0 0.0
    %821 = vmatprep.subr.mxu0 0.0
    %822 = vmatpush2.msra.mxu0 0.0
    %823 = vmatprep.subr.mxu0 0.0
    %824 = vmatpush2.msra.mxu0 0.0
    %825 = vmatprep.subr.mxu0 0.0
    %826 = vmatpush2.msra.mxu0 0.0
    %827 = vmatprep.subr.mxu0 0.0
    %828 = vmatpush2.msra.mxu0 0.0
    %829 = vmatprep.subr.mxu0 0.0
    %830 = vmatpush2.msra.mxu0 0.0
    %831 = vmatprep.subr.mxu0 0.0
    %832 = vmatpush2.msra.mxu0 0.0
    %833 = vmatprep.subr.mxu0 0.0
    %834 = vmatpush2.msra.mxu0 0.0
    %835 = vmatprep.mubr.f32.mxu0 0.0
    %836 = vmatmul.mubr.f32.gmra.mxu0 %v747
    %v837 = vpop.f32.mrf.mxu0
    %v838 = vadd.f32 %v769, %v837
    %v839 = vpop.f32.mrf.mxu0
    %840 = vdwg.mxu0
    %v841 = vlaneseq
    %v842 = vand.u32 %v841, 127
    %vm843 = vcmp.lt.s32.totalorder %v842, 8
    %v844 = vsel %vm843, %v838, -1e+30
    %vm845 = vcmask 1041408
    %v846 = vsel %vm845, %v844, -inf
    %847 = vmax.xlane.f32.xlu0 %v846
    %v848 = vpop.xlane.xlu0 %847
    %v849 = vsub.f32 %v844, %v848
    %v850 = vmul.f32 %v849, 1.442695
    %v851 = vpow.pop %v850
    %v852 = vsel %vm845, %v851, 0.0
    %853 = vadd.xlane.f32.xlu0 %v852
    %v854 = vpop.xlane.xlu0 %853
    %v855 = vrcp.pop %v854
    %v856 = vmul.f32 %v851, %v855
    %857 = vst [vmem:[#allocation11] sm:$0x3] %v856
    // Predicated region
    $region58: #{tpu_custom_call.1} parent=1 // pred_check
      _
    $region59: #{tpu_custom_call.1} parent=1 // pred_check_branch
      %859 = sbr.rel (0) target = $region61
    $region60: #{tpu_custom_call.1} parent=1 // pred_region
      %s861 = ssub.s32 32, 32
      %862 = vsyncadd [#allocation4], %s861
      %s864 = sshll.u32 [#allocation11], 4
      %s865 = int_to_ptr.vmem [resolvable:$true] %s864
      %867 = dma.vmem_to_hbm [thread:$0]  %s865, 32, %s9, [#allocation4]
    $region61: #{tpu_custom_call.1} parent=1 // pred_fallthru
      _
    // Predicated region
    $region62: #{tpu_custom_call.1} parent=1 // pred_check
      _
    $region63: #{tpu_custom_call.1} parent=1 // pred_check_branch
      %869 = sbr.rel (0) target = $region65
    $region64: #{tpu_custom_call.1} parent=1 // pred_region
      %870 = dma.done [#allocation4], 32
    $region65: #{tpu_custom_call.1} parent=1 // pred_fallthru
      _
    %871 = vsyncpa [#allocation3], 1
    %872 = vsyncpa [#allocation6], 1
    %873 = vsyncpa [#allocation9], 1
    %874 = vsyncpa [#allocation4], 1

// kernel: tpu_custom_call.1
$region0: #{tpu_custom_call.1}
  #allocation0 [shape = 'u32[]', space=smem, size = 0x4, offset = 0x4, fixed_abs, tag = 'smem constant byte address 0x4 - core index']
  #allocation1 [shape = 'u32[144,128]{1,0:T(1,128)}', space=vmem, size = 0x12000, scoped, tag = 'internal scratch']
  %s0 = inlined_call_operand.hbm [shape: f32[2,1024], index: 0, kind: input, shape index: {}]
  %s1 = inlined_call_operand.hbm [shape: f32[1024,128], index: 1, kind: input, shape index: {}]
  %s2 = inlined_call_operand.vmem [shape: f32[1,128], index: 2, kind: input, shape index: {}]
  %s3 = inlined_call_operand.hbm [shape: f32[128,128], index: 3, kind: input, shape index: {}]
  %s4 = inlined_call_operand.vmem [shape: f32[1,128], index: 4, kind: input, shape index: {}]
  %s5 = inlined_call_operand.hbm [shape: f32[128,128], index: 5, kind: input, shape index: {}]
  %s6 = inlined_call_operand.vmem [shape: f32[1,128], index: 6, kind: input, shape index: {}]
  %s7 = inlined_call_operand.hbm [shape: f32[128,128], index: 7, kind: input, shape index: {}]
  %s8 = inlined_call_operand.vmem [shape: f32[1,128], index: 8, kind: input, shape index: {}]
  %s9 = inlined_call_operand.hbm [shape: f32[2,128], index: 9, kind: output, shape index: {}]
  %s10 = sld [smem:[#allocation0]]
  $region66: #{tpu_custom_call.1} parent=0
    _
  %s12 = ssub.s32 1, %s10
  %s13 = scalar_select 0, %s12, %s10
  $region1: #{tpu_custom_call.1} parent=0
    #allocation2 [shape = 'u8[8192]{0}', space=vmem, size = 0x2000, scoped, tag = 'input window, operand 0, single buffered']
    #allocation3 [shape = 's32[1]{0}', space=sflag, size = 0x4, scoped, tag = 'scoped memory for tpu_custom_call.1']
    #allocation4 [shape = 's32[1]{0}', space=sflag, size = 0x4, scoped, tag = 'scoped memory for tpu_custom_call.1']
    #allocation5 [shape = 'u8[524288]{0}', space=vmem, size = 0x80000, scoped, tag = 'input window, operand 1, single buffered']
    #allocation6 [shape = 's32[1]{0}', space=sflag, size = 0x4, scoped, tag = 'scoped memory for tpu_custom_call.1']
    #allocation7 [shape = 'u8[65536]{0}', space=vmem, size = 0x10000, scoped, tag = 'input window, operand 3, single buffered']
    #allocation8 [shape = 'u8[65536]{0}', space=vmem, size = 0x10000, scoped, tag = 'input window, operand 5, single buffered']
    #allocation9 [shape = 's32[1]{0}', space=sflag, size = 0x4, scoped, tag = 'scoped memory for tpu_custom_call.1']
    #allocation10 [shape = 'u8[65536]{0}', space=vmem, size = 0x10000, scoped, tag = 'input window, operand 7, single buffered']
    #allocation11 [shape = 'u8[1024]{0}', space=vmem, size = 0x400, scoped, tag = 'output window, operand 0, single buffered']
    %14 = vsyncpa [#allocation3], 0
    %15 = vsyncpa [#allocation6], 0
    %16 = vsyncpa [#allocation9], 0
    %17 = vsyncpa [#allocation4], 0
    // Predicated region
    $region2: #{tpu_custom_call.1} parent=1 // pred_check
      _
    $region3: #{tpu_custom_call.1} parent=1 // pred_check_branch
      %19 = sbr.rel (0) target = $region5
    $region4: #{tpu_custom_call.1} parent=1 // pred_region
      %s21 = ssub.s32 256, 256
      %22 = vsyncadd [#allocation3], %s21
      %s24 = sshll.u32 [#allocation2], 4
      %s25 = int_to_ptr.vmem [resolvable:$true] %s24
      %27 = dma.hbm_to_vmem [thread:$0]  %s0, 256, %s25, [#allocation3]
    $region5: #{tpu_custom_call.1} parent=1 // pred_fallthru
      _
    // Predicated region
    $region6: #{tpu_custom_call.1} parent=1 // pred_check
      _
    $region7: #{tpu_custom_call.1} parent=1 // pred_check_branch
      %29 = sbr.rel (0) target = $region9
    $region8: #{tpu_custom_call.1} parent=1 // pred_region
      %s31 = ssub.s32 16384, 16384
      %32 = vsyncadd [#allocation6], %s31
      %s33 = sshll.u32 [#allocation5], 4
      %s34 = int_to_ptr.vmem [resolvable:$true] %s33
      %39 = dma.hbm_to_vmem [thread:$0]  %s1, 16384, %s34, [#allocation6], 128, 128, 8
    $region9: #{tpu_custom_call.1} parent=1 // pred_fallthru
      _
    // Predicated region
    $region10: #{tpu_custom_call.1} parent=1 // pred_check
      _
    $region11: #{tpu_custom_call.1} parent=1 // pred_check_branch
      %41 = sbr.rel (0) target = $region13
    $region12: #{tpu_custom_call.1} parent=1 // pred_region
      _
    $region13: #{tpu_custom_call.1} parent=1 // pred_fallthru
      _
    // Predicated region
    $region14: #{tpu_custom_call.1} parent=1 // pred_check
      _
    $region15: #{tpu_custom_call.1} parent=1 // pred_check_branch
      %43 = sbr.rel (0) target = $region17
    $region16: #{tpu_custom_call.1} parent=1 // pred_region
      %s45 = ssub.s32 2048, 2048
      %46 = vsyncadd [#allocation6], %s45
      %s47 = sshll.u32 [#allocation7], 4
      %s48 = int_to_ptr.vmem [resolvable:$true] %s47
      %53 = dma.hbm_to_vmem [thread:$0]  %s3, 2048, %s48, [#allocation6], 128, 128, 8
    $region17: #{tpu_custom_call.1} parent=1 // pred_fallthru
      _
    // Predicated region
    $region18: #{tpu_custom_call.1} parent=1 // pred_check
      _
    $region19: #{tpu_custom_call.1} parent=1 // pred_check_branch
      %55 = sbr.rel (0) target = $region21
    $region20: #{tpu_custom_call.1} parent=1 // pred_region
      _
    $region21: #{tpu_custom_call.1} parent=1 // pred_fallthru
      _
    // Predicated region
    $region22: #{tpu_custom_call.1} parent=1 // pred_check
      _
    $region23: #{tpu_custom_call.1} parent=1 // pred_check_branch
      %57 = sbr.rel (0) target = $region25
    $region24: #{tpu_custom_call.1} parent=1 // pred_region
      %s59 = ssub.s32 2048, 2048
      %60 = vsyncadd [#allocation9], %s59
      %s61 = sshll.u32 [#allocation8], 4
      %s62 = int_to_ptr.vmem [resolvable:$true] %s61
      %67 = dma.hbm_to_vmem [thread:$0]  %s5, 2048, %s62, [#allocation9], 128, 128, 8
    $region25: #{tpu_custom_call.1} parent=1 // pred_fallthru
      _
    // Predicated region
    $region26: #{tpu_custom_call.1} parent=1 // pred_check
      _
    $region27: #{tpu_custom_call.1} parent=1 // pred_check_branch
      %69 = sbr.rel (0) target = $region29
    $region28: #{tpu_custom_call.1} parent=1 // pred_region
      _
    $region29: #{tpu_custom_call.1} parent=1 // pred_fallthru
      _
    // Predicated region
    $region30: #{tpu_custom_call.1} parent=1 // pred_check
      _
    $region31: #{tpu_custom_call.1} parent=1 // pred_check_branch
      %71 = sbr.rel (0) target = $region33
    $region32: #{tpu_custom_call.1} parent=1 // pred_region
      %s73 = ssub.s32 2048, 2048
      %74 = vsyncadd [#allocation9], %s73
      %s75 = sshll.u32 [#allocation10], 4
      %s76 = int_to_ptr.vmem [resolvable:$true] %s75
      %81 = dma.hbm_to_vmem [thread:$0]  %s7, 2048, %s76, [#allocation9], 128, 128, 8
    $region33: #{tpu_custom_call.1} parent=1 // pred_fallthru
      _
    // Predicated region
    $region34: #{tpu_custom_call.1} parent=1 // pred_check
      _
    $region35: #{tpu_custom_call.1} parent=1 // pred_check_branch
      %83 = sbr.rel (0) target = $region37
    $region36: #{tpu_custom_call.1} parent=1 // pred_region
      _
    $region37: #{tpu_custom_call.1} parent=1 // pred_fallthru
      _
    // Predicated region
    $region38: #{tpu_custom_call.1} parent=1 // pred_check
      _
    $region39: #{tpu_custom_call.1} parent=1 // pred_check_branch
      %85 = sbr.rel (0) target = $region41
    $region40: #{tpu_custom_call.1} parent=1 // pred_region
      %86 = dma.done [#allocation3], 256
    $region41: #{tpu_custom_call.1} parent=1 // pred_fallthru
      _
    // Predicated region
    $region42: #{tpu_custom_call.1} parent=1 // pred_check
      _
    $region43: #{tpu_custom_call.1} parent=1 // pred_check_branch
      %88 = sbr.rel (0) target = $region45
    $region44: #{tpu_custom_call.1} parent=1 // pred_region
      %89 = dma.done [#allocation6], 16384
    $region45: #{tpu_custom_call.1} parent=1 // pred_fallthru
      _
    // Predicated region
    $region46: #{tpu_custom_call.1} parent=1 // pred_check
      _
    $region47: #{tpu_custom_call.1} parent=1 // pred_check_branch
      %91 = sbr.rel (0) target = $region49
    $region48: #{tpu_custom_call.1} parent=1 // pred_region
      %92 = dma.done [#allocation6], 2048
    $region49: #{tpu_custom_call.1} parent=1 // pred_fallthru
      _
    // Predicated region
    $region50: #{tpu_custom_call.1} parent=1 // pred_check
      _
    $region51: #{tpu_custom_call.1} parent=1 // pred_check_branch
      %94 = sbr.rel (0) target = $region53
    $region52: #{tpu_custom_call.1} parent=1 // pred_region
      %95 = dma.done [#allocation9], 2048
    $region53: #{tpu_custom_call.1} parent=1 // pred_fallthru
      _
    // Predicated region
    $region54: #{tpu_custom_call.1} parent=1 // pred_check
      _
    $region55: #{tpu_custom_call.1} parent=1 // pred_check_branch
      %97 = sbr.rel (0) target = $region57
    $region56: #{tpu_custom_call.1} parent=1 // pred_region
      %98 = dma.done [#allocation9], 2048
    $region57: #{tpu_custom_call.1} parent=1 // pred_fallthru
      _
    %v99 = vld [vmem:[#allocation2] sm:$0xff]
    %v100 = vld [vmem:[#allocation2 + $0x8] sm:$0xff]
    %v101 = vld [vmem:[#allocation5] sm:$0xff]
    %v102 = vld [vmem:[#allocation5 + $0x8] sm:$0xff]
    %v103 = vld [vmem:[#allocation5 + $0x10] sm:$0xff]
    %v104 = vld [vmem:[#allocation5 + $0x18] sm:$0xff]
    %v105 = vld [vmem:[#allocation5 + $0x20] sm:$0xff]
    %v106 = vld [vmem:[#allocation5 + $0x28] sm:$0xff]
    %v107 = vld [vmem:[#allocation5 + $0x30] sm:$0xff]
    %v108 = vld [vmem:[#allocation5 + $0x38] sm:$0xff]
    %v109 = vld [vmem:[#allocation5 + $0x40] sm:$0xff]
    %v110 = vld [vmem:[#allocation5 + $0x48] sm:$0xff]
    %v111 = vld [vmem:[#allocation5 + $0x50] sm:$0xff]
    %v112 = vld [vmem:[#allocation5 + $0x58] sm:$0xff]
    %v113 = vld [vmem:[#allocation5 + $0x60] sm:$0xff]
    %v114 = vld [vmem:[#allocation5 + $0x68] sm:$0xff]
    %v115 = vld [vmem:[#allocation5 + $0x70] sm:$0xff]
    %v116 = vld [vmem:[#allocation5 + $0x78] sm:$0xff]
    %v117 = vld [vmem:[#allocation5 + $0x80] sm:$0xff]
    %v118 = vld [vmem:[#allocation5 + $0x88] sm:$0xff]
    %v119 = vld [vmem:[#allocation5 + $0x90] sm:$0xff]
    %v120 = vld [vmem:[#allocation5 + $0x98] sm:$0xff]
    %v121 = vld [vmem:[#allocation5 + $0xa0] sm:$0xff]
    %v122 = vld [vmem:[#allocation5 + $0xa8] sm:$0xff]
    %v123 = vld [vmem:[#allocation5 + $0xb0] sm:$0xff]
    %v124 = vld [vmem:[#allocation5 + $0xb8] sm:$0xff]
    %v125 = vld [vmem:[#allocation5 + $0xc0] sm:$0xff]
    %v126 = vld [vmem:[#allocation5 + $0xc8] sm:$0xff]
    %v127 = vld [vmem:[#allocation5 + $0xd0] sm:$0xff]
    %v128 = vld [vmem:[#allocation5 + $0xd8] sm:$0xff]
    %v129 = vld [vmem:[#allocation5 + $0xe0] sm:$0xff]
    %v130 = vld [vmem:[#allocation5 + $0xe8] sm:$0xff]
    %v131 = vld [vmem:[#allocation5 + $0xf0] sm:$0xff]
    %v132 = vld [vmem:[#allocation5 + $0xf8] sm:$0xff]
    %v133 = vld [vmem:[#allocation5 + $0x100] sm:$0xff]
    %v134 = vld [vmem:[#allocation5 + $0x108] sm:$0xff]
    %v135 = vld [vmem:[#allocation5 + $0x110] sm:$0xff]
    %v136 = vld [vmem:[#allocation5 + $0x118] sm:$0xff]
    %v137 = vld [vmem:[#allocation5 + $0x120] sm:$0xff]
    %v138 = vld [vmem:[#allocation5 + $0x128] sm:$0xff]
    %v139 = vld [vmem:[#allocation5 + $0x130] sm:$0xff]
    %v140 = vld [vmem:[#allocation5 + $0x138] sm:$0xff]
    %v141 = vld [vmem:[#allocation5 + $0x140] sm:$0xff]
    %v142 = vld [vmem:[#allocation5 + $0x148] sm:$0xff]
    %v143 = vld [vmem:[#allocation5 + $0x150] sm:$0xff]
    %v144 = vld [vmem:[#allocation5 + $0x158] sm:$0xff]
    %v145 = vld [vmem:[#allocation5 + $0x160] sm:$0xff]
    %v146 = vld [vmem:[#allocation5 + $0x168] sm:$0xff]
    %v147 = vld [vmem:[#allocation5 + $0x170] sm:$0xff]
    %v148 = vld [vmem:[#allocation5 + $0x178] sm:$0xff]
    %v149 = vld [vmem:[#allocation5 + $0x180] sm:$0xff]
    %v150 = vld [vmem:[#allocation5 + $0x188] sm:$0xff]
    %v151 = vld [vmem:[#allocation5 + $0x190] sm:$0xff]
    %v152 = vld [vmem:[#allocation5 + $0x198] sm:$0xff]
    %v153 = vld [vmem:[#allocation5 + $0x1a0] sm:$0xff]
    %v154 = vld [vmem:[#allocation5 + $0x1a8] sm:$0xff]
    %v155 = vld [vmem:[#allocation5 + $0x1b0] sm:$0xff]
    %v156 = vld [vmem:[#allocation5 + $0x1b8] sm:$0xff]
    %v157 = vld [vmem:[#allocation5 + $0x1c0] sm:$0xff]
    %v158 = vld [vmem:[#allocation5 + $0x1c8] sm:$0xff]
    %v159 = vld [vmem:[#allocation5 + $0x1d0] sm:$0xff]
    %v160 = vld [vmem:[#allocation5 + $0x1d8] sm:$0xff]
    %v161 = vld [vmem:[#allocation5 + $0x1e0] sm:$0xff]
    %v162 = vld [vmem:[#allocation5 + $0x1e8] sm:$0xff]
    %v163 = vld [vmem:[#allocation5 + $0x1f0] sm:$0xff]
    %v164 = vld [vmem:[#allocation5 + $0x1f8] sm:$0xff]
    %v165 = vld [vmem:[#allocation5 + $0x200] sm:$0xff]
    %v166 = vld [vmem:[#allocation5 + $0x208] sm:$0xff]
    %v167 = vld [vmem:[#allocation5 + $0x210] sm:$0xff]
    %v168 = vld [vmem:[#allocation5 + $0x218] sm:$0xff]
    %v169 = vld [vmem:[#allocation5 + $0x220] sm:$0xff]
    %v170 = vld [vmem:[#allocation5 + $0x228] sm:$0xff]
    %v171 = vld [vmem:[#allocation5 + $0x230] sm:$0xff]
    %v172 = vld [vmem:[#allocation5 + $0x238] sm:$0xff]
    %v173 = vld [vmem:[#allocation5 + $0x240] sm:$0xff]
    %v174 = vld [vmem:[#allocation5 + $0x248] sm:$0xff]
    %v175 = vld [vmem:[#allocation5 + $0x250] sm:$0xff]
    %v176 = vld [vmem:[#allocation5 + $0x258] sm:$0xff]
    %v177 = vld [vmem:[#allocation5 + $0x260] sm:$0xff]
    %v178 = vld [vmem:[#allocation5 + $0x268] sm:$0xff]
    %v179 = vld [vmem:[#allocation5 + $0x270] sm:$0xff]
    %v180 = vld [vmem:[#allocation5 + $0x278] sm:$0xff]
    %v181 = vld [vmem:[#allocation5 + $0x280] sm:$0xff]
    %v182 = vld [vmem:[#allocation5 + $0x288] sm:$0xff]
    %v183 = vld [vmem:[#allocation5 + $0x290] sm:$0xff]
    %v184 = vld [vmem:[#allocation5 + $0x298] sm:$0xff]
    %v185 = vld [vmem:[#allocation5 + $0x2a0] sm:$0xff]
    %v186 = vld [vmem:[#allocation5 + $0x2a8] sm:$0xff]
    %v187 = vld [vmem:[#allocation5 + $0x2b0] sm:$0xff]
    %v188 = vld [vmem:[#allocation5 + $0x2b8] sm:$0xff]
    %v189 = vld [vmem:[#allocation5 + $0x2c0] sm:$0xff]
    %v190 = vld [vmem:[#allocation5 + $0x2c8] sm:$0xff]
    %v191 = vld [vmem:[#allocation5 + $0x2d0] sm:$0xff]
    %v192 = vld [vmem:[#allocation5 + $0x2d8] sm:$0xff]
    %v193 = vld [vmem:[#allocation5 + $0x2e0] sm:$0xff]
    %v194 = vld [vmem:[#allocation5 + $0x2e8] sm:$0xff]
    %v195 = vld [vmem:[#allocation5 + $0x2f0] sm:$0xff]
    %v196 = vld [vmem:[#allocation5 + $0x2f8] sm:$0xff]
    %v197 = vld [vmem:[#allocation5 + $0x300] sm:$0xff]
    %v198 = vld [vmem:[#allocation5 + $0x308] sm:$0xff]
    %v199 = vld [vmem:[#allocation5 + $0x310] sm:$0xff]
    %v200 = vld [vmem:[#allocation5 + $0x318] sm:$0xff]
    %v201 = vld [vmem:[#allocation5 + $0x320] sm:$0xff]
    %v202 = vld [vmem:[#allocation5 + $0x328] sm:$0xff]
    %v203 = vld [vmem:[#allocation5 + $0x330] sm:$0xff]
    %v204 = vld [vmem:[#allocation5 + $0x338] sm:$0xff]
    %v205 = vld [vmem:[#allocation5 + $0x340] sm:$0xff]
    %v206 = vld [vmem:[#allocation5 + $0x348] sm:$0xff]
    %v207 = vld [vmem:[#allocation5 + $0x350] sm:$0xff]
    %v208 = vld [vmem:[#allocation5 + $0x358] sm:$0xff]
    %v209 = vld [vmem:[#allocation5 + $0x360] sm:$0xff]
    %v210 = vld [vmem:[#allocation5 + $0x368] sm:$0xff]
    %v211 = vld [vmem:[#allocation5 + $0x370] sm:$0xff]
    %v212 = vld [vmem:[#allocation5 + $0x378] sm:$0xff]
    %v213 = vld [vmem:[#allocation5 + $0x380] sm:$0xff]
    %v214 = vld [vmem:[#allocation5 + $0x388] sm:$0xff]
    %v215 = vld [vmem:[#allocation5 + $0x390] sm:$0xff]
    %v216 = vld [vmem:[#allocation5 + $0x398] sm:$0xff]
    %v217 = vld [vmem:[#allocation5 + $0x3a0] sm:$0xff]
    %v218 = vld [vmem:[#allocation5 + $0x3a8] sm:$0xff]
    %v219 = vld [vmem:[#allocation5 + $0x3b0] sm:$0xff]
    %v220 = vld [vmem:[#allocation5 + $0x3b8] sm:$0xff]
    %v221 = vld [vmem:[#allocation5 + $0x3c0] sm:$0xff]
    %v222 = vld [vmem:[#allocation5 + $0x3c8] sm:$0xff]
    %v223 = vld [vmem:[#allocation5 + $0x3d0] sm:$0xff]
    %v224 = vld [vmem:[#allocation5 + $0x3d8] sm:$0xff]
    %v225 = vld [vmem:[#allocation5 + $0x3e0] sm:$0xff]
    %v226 = vld [vmem:[#allocation5 + $0x3e8] sm:$0xff]
    %v227 = vld [vmem:[#allocation5 + $0x3f0] sm:$0xff]
    %v228 = vld [vmem:[#allocation5 + $0x3f8] sm:$0xff]
    %v229 = vld [vmem:[%s2] sm:$0x1]
    %v231 = vlaneseq
    %v232 = vshrl.u32 %v231, 7
    %v233 = vsub.s32 0, %v232
    %v234 = vrot.slane %v229, %v233
    %v238 = vcombine.high %v99, %v99
    %v240 = vunpack.c.l.s4 1983009808
    %v241 = vunpack.c.0.s8 %v240
    %v242 = vlaneseq
    %v243 = vshrl.u32 %v242, 7
    %v244 = vsub.s32 %v241, %v243
    %v245 = vrot.slane %v99, %v244
    %v247 = vunpack.c.l.s4 1983009808
    %v248 = vunpack.c.0.s8 %v247
    %v249 = vlaneseq
    %v250 = vshrl.u32 %v249, 7
    %v251 = vsub.s32 %v248, %v250
    %v252 = vrot.slane %v238, %v251
    %v253 = vcombine.high %v245, %v245
    %v254 = vcombine.high %v252, %v252
    %v255 = vcombine.high %v100, %v100
    %v257 = vunpack.c.l.s4 1983009808
    %v258 = vunpack.c.0.s8 %v257
    %v259 = vlaneseq
    %v260 = vshrl.u32 %v259, 7
    %v261 = vsub.s32 %v258, %v260
    %v262 = vrot.slane %v100, %v261
    %v264 = vunpack.c.l.s4 1983009808
    %v265 = vunpack.c.0.s8 %v264
    %v266 = vlaneseq
    %v267 = vshrl.u32 %v266, 7
    %v268 = vsub.s32 %v265, %v267
    %v269 = vrot.slane %v255, %v268
    %v270 = vcombine.high %v262, %v262
    %v271 = vcombine.high %v269, %v269
    %280 = vmatprep.subr.mxu0 0.0
    %281 = vmatpush1.msra.mxu0 %v116
    %282 = vmatprep.subr.mxu0 0.0
    %283 = vmatpush1.msra.mxu0 %v115
    %284 = vmatprep.subr.mxu0 0.0
    %285 = vmatpush1.msra.mxu0 %v114
    %286 = vmatprep.subr.mxu0 0.0
    %287 = vmatpush1.msra.mxu0 %v113
    %288 = vmatprep.subr.mxu0 0.0
    %289 = vmatpush1.msra.mxu0 %v112
    %290 = vmatprep.subr.mxu0 0.0
    %291 = vmatpush1.msra.mxu0 %v111
    %292 = vmatprep.subr.mxu0 0.0
    %293 = vmatpush1.msra.mxu0 %v110
    %294 = vmatprep.subr.mxu0 0.0
    %295 = vmatpush1.msra.mxu0 %v109
    %296 = vmatprep.subr.mxu0 0.0
    %297 = vmatpush1.msra.mxu0 %v108
    %298 = vmatprep.subr.mxu0 0.0
    %299 = vmatpush1.msra.mxu0 %v107
    %300 = vmatprep.subr.mxu0 0.0
    %301 = vmatpush1.msra.mxu0 %v106
    %302 = vmatprep.subr.mxu0 0.0
    %303 = vmatpush1.msra.mxu0 %v105
    %304 = vmatprep.subr.mxu0 0.0
    %305 = vmatpush1.msra.mxu0 %v104
    %306 = vmatprep.subr.mxu0 0.0
    %307 = vmatpush1.msra.mxu0 %v103
    %308 = vmatprep.subr.mxu0 0.0
    %309 = vmatpush1.msra.mxu0 %v102
    %310 = vmatprep.subr.mxu0 0.0
    %311 = vmatpush1.msra.mxu0 %v101
    %312 = vmatprep.subr.mxu0 0.0
    %313 = vmatpush2.msra.mxu0 %v132
    %314 = vmatprep.subr.mxu0 0.0
    %315 = vmatpush2.msra.mxu0 %v131
    %316 = vmatprep.subr.mxu0 0.0
    %317 = vmatpush2.msra.mxu0 %v130
    %318 = vmatprep.subr.mxu0 0.0
    %319 = vmatpush2.msra.mxu0 %v129
    %320 = vmatprep.subr.mxu0 0.0
    %321 = vmatpush2.msra.mxu0 %v128
    %322 = vmatprep.subr.mxu0 0.0
    %323 = vmatpush2.msra.mxu0 %v127
    %324 = vmatprep.subr.mxu0 0.0
    %325 = vmatpush2.msra.mxu0 %v126
    %326 = vmatprep.subr.mxu0 0.0
    %327 = vmatpush2.msra.mxu0 %v125
    %328 = vmatprep.subr.mxu0 0.0
    %329 = vmatpush2.msra.mxu0 %v124
    %330 = vmatprep.subr.mxu0 0.0
    %331 = vmatpush2.msra.mxu0 %v123
    %332 = vmatprep.subr.mxu0 0.0
    %333 = vmatpush2.msra.mxu0 %v122
    %334 = vmatprep.subr.mxu0 0.0
    %335 = vmatpush2.msra.mxu0 %v121
    %336 = vmatprep.subr.mxu0 0.0
    %337 = vmatpush2.msra.mxu0 %v120
    %338 = vmatprep.subr.mxu0 0.0
    %339 = vmatpush2.msra.mxu0 %v119
    %340 = vmatprep.subr.mxu0 0.0
    %341 = vmatpush2.msra.mxu0 %v118
    %342 = vmatprep.subr.mxu0 0.0
    %343 = vmatpush2.msra.mxu0 %v117
    %344 = vmatprep.mubr.f32.mxu0 %v253
    %345 = vmatmul.mubr.f32.gmra.mxu0 %v245
    %v346 = vpop.f32.mrf.mxu0
    %v347 = vadd.f32 %v234, %v346
    %v348 = vpop.f32.mrf.mxu0
    %349 = vdwg.mxu0
    %350 = vmatprep.subr.mxu0 0.0
    %351 = vmatpush1.msra.mxu0 %v148
    %352 = vmatprep.subr.mxu0 0.0
    %353 = vmatpush1.msra.mxu0 %v147
    %354 = vmatprep.subr.mxu0 0.0
    %355 = vmatpush1.msra.mxu0 %v146
    %356 = vmatprep.subr.mxu0 0.0
    %357 = vmatpush1.msra.mxu0 %v145
    %358 = vmatprep.subr.mxu0 0.0
    %359 = vmatpush1.msra.mxu0 %v144
    %360 = vmatprep.subr.mxu0 0.0
    %361 = vmatpush1.msra.mxu0 %v143
    %362 = vmatprep.subr.mxu0 0.0
    %363 = vmatpush1.msra.mxu0 %v142
    %364 = vmatprep.subr.mxu0 0.0
    %365 = vmatpush1.msra.mxu0 %v141
    %366 = vmatprep.subr.mxu0 0.0
    %367 = vmatpush1.msra.mxu0 %v140
    %368 = vmatprep.subr.mxu0 0.0
    %369 = vmatpush1.msra.mxu0 %v139
    %370 = vmatprep.subr.mxu0 0.0
    %371 = vmatpush1.msra.mxu0 %v138
    %372 = vmatprep.subr.mxu0 0.0
    %373 = vmatpush1.msra.mxu0 %v137
    %374 = vmatprep.subr.mxu0 0.0
    %375 = vmatpush1.msra.mxu0 %v136
    %376 = vmatprep.subr.mxu0 0.0
    %377 = vmatpush1.msra.mxu0 %v135
    %378 = vmatprep.subr.mxu0 0.0
    %379 = vmatpush1.msra.mxu0 %v134
    %380 = vmatprep.subr.mxu0 0.0
    %381 = vmatpush1.msra.mxu0 %v133
    %382 = vmatprep.subr.mxu0 0.0
    %383 = vmatpush2.msra.mxu0 %v164
    %384 = vmatprep.subr.mxu0 0.0
    %385 = vmatpush2.msra.mxu0 %v163
    %386 = vmatprep.subr.mxu0 0.0
    %387 = vmatpush2.msra.mxu0 %v162
    %388 = vmatprep.subr.mxu0 0.0
    %389 = vmatpush2.msra.mxu0 %v161
    %390 = vmatprep.subr.mxu0 0.0
    %391 = vmatpush2.msra.mxu0 %v160
    %392 = vmatprep.subr.mxu0 0.0
    %393 = vmatpush2.msra.mxu0 %v159
    %394 = vmatprep.subr.mxu0 0.0
    %395 = vmatpush2.msra.mxu0 %v158
    %396 = vmatprep.subr.mxu0 0.0
    %397 = vmatpush2.msra.mxu0 %v157
    %398 = vmatprep.subr.mxu0 0.0
    %399 = vmatpush2.msra.mxu0 %v156
    %400 = vmatprep.subr.mxu0 0.0
    %401 = vmatpush2.msra.mxu0 %v155
    %402 = vmatprep.subr.mxu0 0.0
    %403 = vmatpush2.msra.mxu0 %v154
    %404 = vmatprep.subr.mxu0 0.0
    %405 = vmatpush2.msra.mxu0 %v153
    %406 = vmatprep.subr.mxu0 0.0
    %407 = vmatpush2.msra.mxu0 %v152
    %408 = vmatprep.subr.mxu0 0.0
    %409 = vmatpush2.msra.mxu0 %v151
    %410 = vmatprep.subr.mxu0 0.0
    %411 = vmatpush2.msra.mxu0 %v150
    %412 = vmatprep.subr.mxu0 0.0
    %413 = vmatpush2.msra.mxu0 %v149
    %414 = vmatprep.mubr.f32.mxu0 %v254
    %415 = vmatmul.mubr.f32.gmra.mxu0 %v252
    %v416 = vpop.f32.mrf.mxu0
    %v417 = vadd.f32 %v347, %v416
    %v418 = vpop.f32.mrf.mxu0
    %419 = vdwg.mxu0
    %420 = vmatprep.subr.mxu0 0.0
    %421 = vmatpush1.msra.mxu0 %v180
    %422 = vmatprep.subr.mxu0 0.0
    %423 = vmatpush1.msra.mxu0 %v179
    %424 = vmatprep.subr.mxu0 0.0
    %425 = vmatpush1.msra.mxu0 %v178
    %426 = vmatprep.subr.mxu0 0.0
    %427 = vmatpush1.msra.mxu0 %v177
    %428 = vmatprep.subr.mxu0 0.0
    %429 = vmatpush1.msra.mxu0 %v176
    %430 = vmatprep.subr.mxu0 0.0
    %431 = vmatpush1.msra.mxu0 %v175
    %432 = vmatprep.subr.mxu0 0.0
    %433 = vmatpush1.msra.mxu0 %v174
    %434 = vmatprep.subr.mxu0 0.0
    %435 = vmatpush1.msra.mxu0 %v173
    %436 = vmatprep.subr.mxu0 0.0
    %437 = vmatpush1.msra.mxu0 %v172
    %438 = vmatprep.subr.mxu0 0.0
    %439 = vmatpush1.msra.mxu0 %v171
    %440 = vmatprep.subr.mxu0 0.0
    %441 = vmatpush1.msra.mxu0 %v170
    %442 = vmatprep.subr.mxu0 0.0
    %443 = vmatpush1.msra.mxu0 %v169
    %444 = vmatprep.subr.mxu0 0.0
    %445 = vmatpush1.msra.mxu0 %v168
    %446 = vmatprep.subr.mxu0 0.0
    %447 = vmatpush1.msra.mxu0 %v167
    %448 = vmatprep.subr.mxu0 0.0
    %449 = vmatpush1.msra.mxu0 %v166
    %450 = vmatprep.subr.mxu0 0.0
    %451 = vmatpush1.msra.mxu0 %v165
    %452 = vmatprep.subr.mxu0 0.0
    %453 = vmatpush2.msra.mxu0 %v196
    %454 = vmatprep.subr.mxu0 0.0
    %455 = vmatpush2.msra.mxu0 %v195
    %456 = vmatprep.subr.mxu0 0.0
    %457 = vmatpush2.msra.mxu0 %v194
    %458 = vmatprep.subr.mxu0 0.0
    %459 = vmatpush2.msra.mxu0 %v193
    %460 = vmatprep.subr.mxu0 0.0
    %461 = vmatpush2.msra.mxu0 %v192
    %462 = vmatprep.subr.mxu0 0.0
    %463 = vmatpush2.msra.mxu0 %v191
    %464 = vmatprep.subr.mxu0 0.0
    %465 = vmatpush2.msra.mxu0 %v190
    %466 = vmatprep.subr.mxu0 0.0
    %467 = vmatpush2.msra.mxu0 %v189
    %468 = vmatprep.subr.mxu0 0.0
    %469 = vmatpush2.msra.mxu0 %v188
    %470 = vmatprep.subr.mxu0 0.0
    %471 = vmatpush2.msra.mxu0 %v187
    %472 = vmatprep.subr.mxu0 0.0
    %473 = vmatpush2.msra.mxu0 %v186
    %474 = vmatprep.subr.mxu0 0.0
    %475 = vmatpush2.msra.mxu0 %v185
    %476 = vmatprep.subr.mxu0 0.0
    %477 = vmatpush2.msra.mxu0 %v184
    %478 = vmatprep.subr.mxu0 0.0
    %479 = vmatpush2.msra.mxu0 %v183
    %480 = vmatprep.subr.mxu0 0.0
    %481 = vmatpush2.msra.mxu0 %v182
    %482 = vmatprep.subr.mxu0 0.0
    %483 = vmatpush2.msra.mxu0 %v181
    %484 = vmatprep.mubr.f32.mxu0 %v270
    %485 = vmatmul.mubr.f32.gmra.mxu0 %v262
    %v486 = vpop.f32.mrf.mxu0
    %v487 = vadd.f32 %v417, %v486
    %v488 = vpop.f32.mrf.mxu0
    %489 = vdwg.mxu0
    %490 = vmatprep.subr.mxu0 0.0
    %491 = vmatpush1.msra.mxu0 %v212
    %492 = vmatprep.subr.mxu0 0.0
    %493 = vmatpush1.msra.mxu0 %v211
    %494 = vmatprep.subr.mxu0 0.0
    %495 = vmatpush1.msra.mxu0 %v210
    %496 = vmatprep.subr.mxu0 0.0
    %497 = vmatpush1.msra.mxu0 %v209
    %498 = vmatprep.subr.mxu0 0.0
    %499 = vmatpush1.msra.mxu0 %v208
    %500 = vmatprep.subr.mxu0 0.0
    %501 = vmatpush1.msra.mxu0 %v207
    %502 = vmatprep.subr.mxu0 0.0
    %503 = vmatpush1.msra.mxu0 %v206
    %504 = vmatprep.subr.mxu0 0.0
    %505 = vmatpush1.msra.mxu0 %v205
    %506 = vmatprep.subr.mxu0 0.0
    %507 = vmatpush1.msra.mxu0 %v204
    %508 = vmatprep.subr.mxu0 0.0
    %509 = vmatpush1.msra.mxu0 %v203
    %510 = vmatprep.subr.mxu0 0.0
    %511 = vmatpush1.msra.mxu0 %v202
    %512 = vmatprep.subr.mxu0 0.0
    %513 = vmatpush1.msra.mxu0 %v201
    %514 = vmatprep.subr.mxu0 0.0
    %515 = vmatpush1.msra.mxu0 %v200
    %516 = vmatprep.subr.mxu0 0.0
    %517 = vmatpush1.msra.mxu0 %v199
    %518 = vmatprep.subr.mxu0 0.0
    %519 = vmatpush1.msra.mxu0 %v198
    %520 = vmatprep.subr.mxu0 0.0
    %521 = vmatpush1.msra.mxu0 %v197
    %522 = vmatprep.subr.mxu0 0.0
    %523 = vmatpush2.msra.mxu0 %v228
    %524 = vmatprep.subr.mxu0 0.0
    %525 = vmatpush2.msra.mxu0 %v227
    %526 = vmatprep.subr.mxu0 0.0
    %527 = vmatpush2.msra.mxu0 %v226
    %528 = vmatprep.subr.mxu0 0.0
    %529 = vmatpush2.msra.mxu0 %v225
    %530 = vmatprep.subr.mxu0 0.0
    %531 = vmatpush2.msra.mxu0 %v224
    %532 = vmatprep.subr.mxu0 0.0
    %533 = vmatpush2.msra.mxu0 %v223
    %534 = vmatprep.subr.mxu0 0.0
    %535 = vmatpush2.msra.mxu0 %v222
    %536 = vmatprep.subr.mxu0 0.0
    %537 = vmatpush2.msra.mxu0 %v221
    %538 = vmatprep.subr.mxu0 0.0
    %539 = vmatpush2.msra.mxu0 %v220
    %540 = vmatprep.subr.mxu0 0.0
    %541 = vmatpush2.msra.mxu0 %v219
    %542 = vmatprep.subr.mxu0 0.0
    %543 = vmatpush2.msra.mxu0 %v218
    %544 = vmatprep.subr.mxu0 0.0
    %545 = vmatpush2.msra.mxu0 %v217
    %546 = vmatprep.subr.mxu0 0.0
    %547 = vmatpush2.msra.mxu0 %v216
    %548 = vmatprep.subr.mxu0 0.0
    %549 = vmatpush2.msra.mxu0 %v215
    %550 = vmatprep.subr.mxu0 0.0
    %551 = vmatpush2.msra.mxu0 %v214
    %552 = vmatprep.subr.mxu0 0.0
    %553 = vmatpush2.msra.mxu0 %v213
    %554 = vmatprep.mubr.f32.mxu0 %v271
    %555 = vmatmul.mubr.f32.gmra.mxu0 %v269
    %v556 = vpop.f32.mrf.mxu0
    %v557 = vadd.f32 %v487, %v556
    %v558 = vpop.f32.mrf.mxu0
    %559 = vdwg.mxu0
    %v560 = vmax.f32 %v557, 0.0
    %v561 = vld [vmem:[#allocation7] sm:$0xff]
    %v562 = vld [vmem:[#allocation7 + $0x8] sm:$0xff]
    %v563 = vld [vmem:[#allocation7 + $0x10] sm:$0xff]
    %v564 = vld [vmem:[#allocation7 + $0x18] sm:$0xff]
    %v565 = vld [vmem:[#allocation7 + $0x20] sm:$0xff]
    %v566 = vld [vmem:[#allocation7 + $0x28] sm:$0xff]
    %v567 = vld [vmem:[#allocation7 + $0x30] sm:$0xff]
    %v568 = vld [vmem:[#allocation7 + $0x38] sm:$0xff]
    %v569 = vld [vmem:[#allocation7 + $0x40] sm:$0xff]
    %v570 = vld [vmem:[#allocation7 + $0x48] sm:$0xff]
    %v571 = vld [vmem:[#allocation7 + $0x50] sm:$0xff]
    %v572 = vld [vmem:[#allocation7 + $0x58] sm:$0xff]
    %v573 = vld [vmem:[#allocation7 + $0x60] sm:$0xff]
    %v574 = vld [vmem:[#allocation7 + $0x68] sm:$0xff]
    %v575 = vld [vmem:[#allocation7 + $0x70] sm:$0xff]
    %v576 = vld [vmem:[#allocation7 + $0x78] sm:$0xff]
    %v577 = vld [vmem:[%s4] sm:$0x1]
    %v579 = vlaneseq
    %v580 = vshrl.u32 %v579, 7
    %v581 = vsub.s32 0, %v580
    %v582 = vrot.slane %v577, %v581
    %584 = vmatprep.subr.mxu0 0.0
    %585 = vmatpush1.msra.mxu0 %v576
    %586 = vmatprep.subr.mxu0 0.0
    %587 = vmatpush1.msra.mxu0 %v575
    %588 = vmatprep.subr.mxu0 0.0
    %589 = vmatpush1.msra.mxu0 %v574
    %590 = vmatprep.subr.mxu0 0.0
    %591 = vmatpush1.msra.mxu0 %v573
    %592 = vmatprep.subr.mxu0 0.0
    %593 = vmatpush1.msra.mxu0 %v572
    %594 = vmatprep.subr.mxu0 0.0
    %595 = vmatpush1.msra.mxu0 %v571
    %596 = vmatprep.subr.mxu0 0.0
    %597 = vmatpush1.msra.mxu0 %v570
    %598 = vmatprep.subr.mxu0 0.0
    %599 = vmatpush1.msra.mxu0 %v569
    %600 = vmatprep.subr.mxu0 0.0
    %601 = vmatpush1.msra.mxu0 %v568
    %602 = vmatprep.subr.mxu0 0.0
    %603 = vmatpush1.msra.mxu0 %v567
    %604 = vmatprep.subr.mxu0 0.0
    %605 = vmatpush1.msra.mxu0 %v566
    %606 = vmatprep.subr.mxu0 0.0
    %607 = vmatpush1.msra.mxu0 %v565
    %608 = vmatprep.subr.mxu0 0.0
    %609 = vmatpush1.msra.mxu0 %v564
    %610 = vmatprep.subr.mxu0 0.0
    %611 = vmatpush1.msra.mxu0 %v563
    %612 = vmatprep.subr.mxu0 0.0
    %613 = vmatpush1.msra.mxu0 %v562
    %614 = vmatprep.subr.mxu0 0.0
    %615 = vmatpush1.msra.mxu0 %v561
    %616 = vmatprep.subr.mxu0 0.0
    %617 = vmatpush2.msra.mxu0 0.0
    %618 = vmatprep.subr.mxu0 0.0
    %619 = vmatpush2.msra.mxu0 0.0
    %620 = vmatprep.subr.mxu0 0.0
    %621 = vmatpush2.msra.mxu0 0.0
    %622 = vmatprep.subr.mxu0 0.0
    %623 = vmatpush2.msra.mxu0 0.0
    %624 = vmatprep.subr.mxu0 0.0
    %625 = vmatpush2.msra.mxu0 0.0
    %626 = vmatprep.subr.mxu0 0.0
    %627 = vmatpush2.msra.mxu0 0.0
    %628 = vmatprep.subr.mxu0 0.0
    %629 = vmatpush2.msra.mxu0 0.0
    %630 = vmatprep.subr.mxu0 0.0
    %631 = vmatpush2.msra.mxu0 0.0
    %632 = vmatprep.subr.mxu0 0.0
    %633 = vmatpush2.msra.mxu0 0.0
    %634 = vmatprep.subr.mxu0 0.0
    %635 = vmatpush2.msra.mxu0 0.0
    %636 = vmatprep.subr.mxu0 0.0
    %637 = vmatpush2.msra.mxu0 0.0
    %638 = vmatprep.subr.mxu0 0.0
    %639 = vmatpush2.msra.mxu0 0.0
    %640 = vmatprep.subr.mxu0 0.0
    %641 = vmatpush2.msra.mxu0 0.0
    %642 = vmatprep.subr.mxu0 0.0
    %643 = vmatpush2.msra.mxu0 0.0
    %644 = vmatprep.subr.mxu0 0.0
    %645 = vmatpush2.msra.mxu0 0.0
    %646 = vmatprep.subr.mxu0 0.0
    %647 = vmatpush2.msra.mxu0 0.0
    %648 = vmatprep.mubr.f32.mxu0 0.0
    %649 = vmatmul.mubr.f32.gmra.mxu0 %v560
    %v650 = vpop.f32.mrf.mxu0
    %v651 = vadd.f32 %v582, %v650
    %v652 = vpop.f32.mrf.mxu0
    %653 = vdwg.mxu0
    %v654 = vld [vmem:[#allocation8] sm:$0xff]
    %v655 = vld [vmem:[#allocation8 + $0x8] sm:$0xff]
    %v656 = vld [vmem:[#allocation8 + $0x10] sm:$0xff]
    %v657 = vld [vmem:[#allocation8 + $0x18] sm:$0xff]
    %v658 = vld [vmem:[#allocation8 + $0x20] sm:$0xff]
    %v659 = vld [vmem:[#allocation8 + $0x28] sm:$0xff]
    %v660 = vld [vmem:[#allocation8 + $0x30] sm:$0xff]
    %v661 = vld [vmem:[#allocation8 + $0x38] sm:$0xff]
    %v662 = vld [vmem:[#allocation8 + $0x40] sm:$0xff]
    %v663 = vld [vmem:[#allocation8 + $0x48] sm:$0xff]
    %v664 = vld [vmem:[#allocation8 + $0x50] sm:$0xff]
    %v665 = vld [vmem:[#allocation8 + $0x58] sm:$0xff]
    %v666 = vld [vmem:[#allocation8 + $0x60] sm:$0xff]
    %v667 = vld [vmem:[#allocation8 + $0x68] sm:$0xff]
    %v668 = vld [vmem:[#allocation8 + $0x70] sm:$0xff]
    %v669 = vld [vmem:[#allocation8 + $0x78] sm:$0xff]
    %v670 = vld [vmem:[%s6] sm:$0x1]
    %v672 = vlaneseq
    %v673 = vshrl.u32 %v672, 7
    %v674 = vsub.s32 0, %v673
    %v675 = vrot.slane %v670, %v674
    %677 = vmatprep.subr.mxu0 0.0
    %678 = vmatpush1.msra.mxu0 %v669
    %679 = vmatprep.subr.mxu0 0.0
    %680 = vmatpush1.msra.mxu0 %v668
    %681 = vmatprep.subr.mxu0 0.0
    %682 = vmatpush1.msra.mxu0 %v667
    %683 = vmatprep.subr.mxu0 0.0
    %684 = vmatpush1.msra.mxu0 %v666
    %685 = vmatprep.subr.mxu0 0.0
    %686 = vmatpush1.msra.mxu0 %v665
    %687 = vmatprep.subr.mxu0 0.0
    %688 = vmatpush1.msra.mxu0 %v664
    %689 = vmatprep.subr.mxu0 0.0
    %690 = vmatpush1.msra.mxu0 %v663
    %691 = vmatprep.subr.mxu0 0.0
    %692 = vmatpush1.msra.mxu0 %v662
    %693 = vmatprep.subr.mxu0 0.0
    %694 = vmatpush1.msra.mxu0 %v661
    %695 = vmatprep.subr.mxu0 0.0
    %696 = vmatpush1.msra.mxu0 %v660
    %697 = vmatprep.subr.mxu0 0.0
    %698 = vmatpush1.msra.mxu0 %v659
    %699 = vmatprep.subr.mxu0 0.0
    %700 = vmatpush1.msra.mxu0 %v658
    %701 = vmatprep.subr.mxu0 0.0
    %702 = vmatpush1.msra.mxu0 %v657
    %703 = vmatprep.subr.mxu0 0.0
    %704 = vmatpush1.msra.mxu0 %v656
    %705 = vmatprep.subr.mxu0 0.0
    %706 = vmatpush1.msra.mxu0 %v655
    %707 = vmatprep.subr.mxu0 0.0
    %708 = vmatpush1.msra.mxu0 %v654
    %709 = vmatprep.subr.mxu0 0.0
    %710 = vmatpush2.msra.mxu0 0.0
    %711 = vmatprep.subr.mxu0 0.0
    %712 = vmatpush2.msra.mxu0 0.0
    %713 = vmatprep.subr.mxu0 0.0
    %714 = vmatpush2.msra.mxu0 0.0
    %715 = vmatprep.subr.mxu0 0.0
    %716 = vmatpush2.msra.mxu0 0.0
    %717 = vmatprep.subr.mxu0 0.0
    %718 = vmatpush2.msra.mxu0 0.0
    %719 = vmatprep.subr.mxu0 0.0
    %720 = vmatpush2.msra.mxu0 0.0
    %721 = vmatprep.subr.mxu0 0.0
    %722 = vmatpush2.msra.mxu0 0.0
    %723 = vmatprep.subr.mxu0 0.0
    %724 = vmatpush2.msra.mxu0 0.0
    %725 = vmatprep.subr.mxu0 0.0
    %726 = vmatpush2.msra.mxu0 0.0
    %727 = vmatprep.subr.mxu0 0.0
    %728 = vmatpush2.msra.mxu0 0.0
    %729 = vmatprep.subr.mxu0 0.0
    %730 = vmatpush2.msra.mxu0 0.0
    %731 = vmatprep.subr.mxu0 0.0
    %732 = vmatpush2.msra.mxu0 0.0
    %733 = vmatprep.subr.mxu0 0.0
    %734 = vmatpush2.msra.mxu0 0.0
    %735 = vmatprep.subr.mxu0 0.0
    %736 = vmatpush2.msra.mxu0 0.0
    %737 = vmatprep.subr.mxu0 0.0
    %738 = vmatpush2.msra.mxu0 0.0
    %739 = vmatprep.subr.mxu0 0.0
    %740 = vmatpush2.msra.mxu0 0.0
    %741 = vmatprep.mubr.f32.mxu0 0.0
    %742 = vmatmul.mubr.f32.gmra.mxu0 %v651
    %v743 = vpop.f32.mrf.mxu0
    %v744 = vadd.f32 %v675, %v743
    %v745 = vpop.f32.mrf.mxu0
    %746 = vdwg.mxu0
    %v747 = vmax.f32 %v744, 0.0
    %v748 = vld [vmem:[#allocation10] sm:$0xff]
    %v749 = vld [vmem:[#allocation10 + $0x8] sm:$0xff]
    %v750 = vld [vmem:[#allocation10 + $0x10] sm:$0xff]
    %v751 = vld [vmem:[#allocation10 + $0x18] sm:$0xff]
    %v752 = vld [vmem:[#allocation10 + $0x20] sm:$0xff]
    %v753 = vld [vmem:[#allocation10 + $0x28] sm:$0xff]
    %v754 = vld [vmem:[#allocation10 + $0x30] sm:$0xff]
    %v755 = vld [vmem:[#allocation10 + $0x38] sm:$0xff]
    %v756 = vld [vmem:[#allocation10 + $0x40] sm:$0xff]
    %v757 = vld [vmem:[#allocation10 + $0x48] sm:$0xff]
    %v758 = vld [vmem:[#allocation10 + $0x50] sm:$0xff]
    %v759 = vld [vmem:[#allocation10 + $0x58] sm:$0xff]
    %v760 = vld [vmem:[#allocation10 + $0x60] sm:$0xff]
    %v761 = vld [vmem:[#allocation10 + $0x68] sm:$0xff]
    %v762 = vld [vmem:[#allocation10 + $0x70] sm:$0xff]
    %v763 = vld [vmem:[#allocation10 + $0x78] sm:$0xff]
    %v764 = vld [vmem:[%s8] sm:$0x1]
    %v766 = vlaneseq
    %v767 = vshrl.u32 %v766, 7
    %v768 = vsub.s32 0, %v767
    %v769 = vrot.slane %v764, %v768
    %771 = vmatprep.subr.mxu0 0.0
    %772 = vmatpush1.msra.mxu0 %v763
    %773 = vmatprep.subr.mxu0 0.0
    %774 = vmatpush1.msra.mxu0 %v762
    %775 = vmatprep.subr.mxu0 0.0
    %776 = vmatpush1.msra.mxu0 %v761
    %777 = vmatprep.subr.mxu0 0.0
    %778 = vmatpush1.msra.mxu0 %v760
    %779 = vmatprep.subr.mxu0 0.0
    %780 = vmatpush1.msra.mxu0 %v759
    %781 = vmatprep.subr.mxu0 0.0
    %782 = vmatpush1.msra.mxu0 %v758
    %783 = vmatprep.subr.mxu0 0.0
    %784 = vmatpush1.msra.mxu0 %v757
    %785 = vmatprep.subr.mxu0 0.0
    %786 = vmatpush1.msra.mxu0 %v756
    %787 = vmatprep.subr.mxu0 0.0
    %788 = vmatpush1.msra.mxu0 %v755
    %789 = vmatprep.subr.mxu0 0.0
    %790 = vmatpush1.msra.mxu0 %v754
    %791 = vmatprep.subr.mxu0 0.0
    %792 = vmatpush1.msra.mxu0 %v753
    %793 = vmatprep.subr.mxu0 0.0
    %794 = vmatpush1.msra.mxu0 %v752
    %795 = vmatprep.subr.mxu0 0.0
    %796 = vmatpush1.msra.mxu0 %v751
    %797 = vmatprep.subr.mxu0 0.0
    %798 = vmatpush1.msra.mxu0 %v750
    %799 = vmatprep.subr.mxu0 0.0
    %800 = vmatpush1.msra.mxu0 %v749
    %801 = vmatprep.subr.mxu0 0.0
    %802 = vmatpush1.msra.mxu0 %v748
    %803 = vmatprep.subr.mxu0 0.0
    %804 = vmatpush2.msra.mxu0 0.0
    %805 = vmatprep.subr.mxu0 0.0
    %806 = vmatpush2.msra.mxu0 0.0
    %807 = vmatprep.subr.mxu0 0.0
    %808 = vmatpush2.msra.mxu0 0.0
    %809 = vmatprep.subr.mxu0 0.0
    %810 = vmatpush2.msra.mxu0 0.0
    %811 = vmatprep.subr.mxu0 0.0
    %812 = vmatpush2.msra.mxu0 0.0
    %813 = vmatprep.subr.mxu0 0.0
    %814 = vmatpush2.msra.mxu0 0.0
    %815 = vmatprep.subr.mxu0 0.0
    %816 = vmatpush2.msra.mxu0 0.0
    %817 = vmatprep.subr.mxu0 0.0
    %818 = vmatpush2.msra.mxu0 0.0
    %819 = vmatprep.subr.mxu0 0.0
    %820 = vmatpush2.msra.mxu0 0.0
    %821 = vmatprep.subr.mxu0 0.0
    %822 = vmatpush2.msra.mxu0 0.0
    %823 = vmatprep.subr.mxu0 0.0
    %824 = vmatpush2.msra.mxu0 0.0
    %825 = vmatprep.subr.mxu0 0.0
    %826 = vmatpush2.msra.mxu0 0.0
    %827 = vmatprep.subr.mxu0 0.0
    %828 = vmatpush2.msra.mxu0 0.0
    %829 = vmatprep.subr.mxu0 0.0
    %830 = vmatpush2.msra.mxu0 0.0
    %831 = vmatprep.subr.mxu0 0.0
    %832 = vmatpush2.msra.mxu0 0.0
    %833 = vmatprep.subr.mxu0 0.0
    %834 = vmatpush2.msra.mxu0 0.0
    %835 = vmatprep.mubr.f32.mxu0 0.0
    %836 = vmatmul.mubr.f32.gmra.mxu0 %v747
    %v837 = vpop.f32.mrf.mxu0
    %v838 = vadd.f32 %v769, %v837
    %v839 = vpop.f32.mrf.mxu0
    %840 = vdwg.mxu0
    %v841 = vlaneseq
    %v842 = vand.u32 %v841, 127
    %vm843 = vcmp.lt.s32.totalorder %v842, 8
    %v844 = vsel %vm843, %v838, -1e+30
    %vm845 = vcmask 1041408
    %v846 = vsel %vm845, %v844, -inf
    %847 = vmax.xlane.f32.xlu0 %v846
    %v848 = vpop.xlane.xlu0 %847
    %v849 = vsub.f32 %v844, %v848
    %v850 = vmul.f32 %v849, 1.442695
    %v851 = vpow.pop %v850
    %v852 = vsel %vm845, %v851, 0.0
    %853 = vadd.xlane.f32.xlu0 %v852
    %v854 = vpop.xlane.xlu0 %853
    %v855 = vrcp.pop %v854
    %v856 = vmul.f32 %v851, %v855
    %857 = vst [vmem:[#allocation11] sm:$0x3] %v856
    // Predicated region
    $region58: #{tpu_custom_call.1} parent=1 // pred_check
      _
    $region59: #{tpu_custom_call.1} parent=1 // pred_check_branch
      %859 = sbr.rel (0) target = $region61
    $region60: #{tpu_custom_call.1} parent=1 // pred_region
      %s861 = ssub.s32 32, 32
      %862 = vsyncadd [#allocation4], %s861
      %s864 = sshll.u32 [#allocation11], 4
      %s865 = int_to_ptr.vmem [resolvable:$true] %s864
      %867 = dma.vmem_to_hbm [thread:$0]  %s865, 32, %s9, [#allocation4]
    $region61: #{tpu_custom_call.1} parent=1 // pred_fallthru
      _
    // Predicated region
    $region62: #{tpu_custom_call.1} parent=1 // pred_check
      _
    $region63: #{tpu_custom_call.1} parent=1 // pred_check_branch
      %869 = sbr.rel (0) target = $region65
    $region64: #{tpu_custom_call.1} parent=1 // pred_region
      %870 = dma.done [#allocation4], 32
    $region65: #{tpu_custom_call.1} parent=1 // pred_fallthru
      _
    %871 = vsyncpa [#allocation3], 1
    %872 = vsyncpa [#allocation6], 1
    %873 = vsyncpa [#allocation9], 1
    %874 = vsyncpa [#allocation4], 1

</llo_original>
